<compile_context>
chip_gen: v5e
topology: v5e:2x2
jax: 0.10.0
libtpu: 0.0.40
codegen_flags: <defaults>
</compile_context>

<pallas_src>
import functools

import jax
import jax.numpy as jnp
from jax.experimental import pallas as pl
from jax.experimental.pallas import tpu as pltpu

# Feature sizes from the torch module.
D_IN = 360
D_HID = 200
D_OUT = 340
N_EXP = 93          # first 93 output columns are abs()'d

# Lane-padded hidden width used inside the kernel (multiple of 128).
D_HID_P = 256


def _round_up(n, m):
    return (n + m - 1) // m * m


def _choose_batch_tile(B, max_tile):
    """Pick (batch_tile, padded_B): tile is a multiple of 8, <= max_tile,
    gives >= 2 grid steps when B >= 16 (v7x has two TensorCores), and keeps
    the number of dead padded rows small."""
    max_tile = _round_up(max(max_tile, 8), 8)
    B8 = _round_up(max(B, 1), 8)
    if B8 < 16:                       # cannot split into two >= 8-row tiles
        return B8, B8
    n_steps = max(2, pl.cdiv(B8, max_tile))
    tile = _round_up(pl.cdiv(B8, n_steps), 8)
    return tile, tile * n_steps


def _net_cno_kernel(x_ref,
                    w1_ref, b1_ref,
                    w2_ref, b2_ref,
                    w3_ref, b3_ref,
                    w4_ref, b4_ref,
                    w5_ref, b5_ref,
                    o_ref, *, act_dtype):
    """One batch tile of the fused 5-layer MLP (+ abs on the first 93 cols)."""

    def dense(a, w_ref, b_ref):
        # MXU matmul in the weights' dtype (bf16 or f32), f32 accumulation,
        # f32 bias-add.
        return jnp.dot(a.astype(w_ref.dtype), w_ref[...],
                       preferred_element_type=jnp.float32) + b_ref[...]

    h = x_ref[...]
    for w_ref, b_ref in ((w1_ref, b1_ref), (w2_ref, b2_ref),
                         (w3_ref, b3_ref), (w4_ref, b4_ref)):
        # act_dtype=bf16 keeps tanh + next-layer operands in bf16 (v6e/v7x
        # EUP/VPU are bf16-capable); act_dtype=f32 is the safe default.
        h = jnp.tanh(dense(h, w_ref, b_ref).astype(act_dtype))
    h = dense(h, w5_ref, b5_ref)          # (bt, 340), f32

    # exp, coef = abs(h[:, :93]), h[:, 93:]; cat keeps layout -> just mask.
    col = jax.lax.broadcasted_iota(jnp.int32, h.shape, dimension=1)
    o_ref[...] = jnp.where(col < N_EXP, jnp.abs(h), h).astype(o_ref.dtype)


@functools.partial(jax.jit,
                   static_argnames=("max_batch_tile", "use_bf16", "bf16_act"))
def net_cno_forward(x, params, max_batch_tile=512, use_bf16=True,
                    bf16_act=False):
    """Forward pass.  x: (B, 360)  ->  (B, 340) f32.

    Pass x already in bf16 (use_bf16=True path) to halve the input DMA bytes;
    the kernel casts to the matmul dtype internally either way.
    """
    B = x.shape[0]
    tile, Bp = _choose_batch_tile(B, max_batch_tile)

    # Only the batch axis is (minimally) padded, and only when needed; the
    # feature axis stays at its true 360 width so there is no wide pad of x.
    if Bp != B:
        x = jnp.pad(x, ((0, Bp - B), (0, 0)))

    w_dt = jnp.bfloat16 if use_bf16 else jnp.float32
    act_dtype = jnp.bfloat16 if (use_bf16 and bf16_act) else jnp.float32
    (w1, b1, w2, b2, w3, b3, w4, b4, w5, b5) = params

    # Zero-padded hidden rows/cols of the (tiny) weights leave the math exact.
    def pad_w(w, rows, cols):
        return jnp.pad(w, ((0, rows - w.shape[0]),
                           (0, cols - w.shape[1]))).astype(w_dt)

    def pad_b(b, cols):
        return jnp.pad(b, ((0, 0), (0, cols - b.shape[1]))).astype(jnp.float32)

    padded = (pad_w(w1, D_IN, D_HID_P),    pad_b(b1, D_HID_P),   # (360, 256)
              pad_w(w2, D_HID_P, D_HID_P), pad_b(b2, D_HID_P),
              pad_w(w3, D_HID_P, D_HID_P), pad_b(b3, D_HID_P),
              pad_w(w4, D_HID_P, D_HID_P), pad_b(b4, D_HID_P),
              pad_w(w5, D_HID_P, D_OUT),   pad_b(b5, D_OUT))     # (256, 340)

    grid = (Bp // tile,)

    # Last block dim == full array dim (360 / 340), so the (8,128) rule is
    # satisfied without padding the feature axes of x / out in HBM.
    x_spec = pl.BlockSpec((tile, D_IN), lambda i: (i, 0))
    out_spec = pl.BlockSpec((tile, D_OUT), lambda i: (i, 0))
    # Weights/biases: full arrays, constant index_map -> VMEM-resident across
    # every grid step (no re-DMA).
    weight_specs = [pl.BlockSpec(p.shape, lambda i: (0, 0)) for p in padded]

    out_p = pl.pallas_call(
        functools.partial(_net_cno_kernel, act_dtype=act_dtype),
        out_shape=jax.ShapeDtypeStruct((Bp, D_OUT), jnp.float32),
        grid_spec=pltpu.PrefetchScalarGridSpec(
            num_scalar_prefetch=0,
            grid=grid,
            in_specs=[x_spec] + weight_specs,
            out_specs=out_spec,
        ),
        compiler_params=pltpu.CompilerParams(
            dimension_semantics=("parallel",)),   # batch axis -> both TCs on v7x
    )(x, *padded)

    return out_p if Bp == B else out_p[:B]


def init_params(key):
    """Deterministic init mimicking nn.Linear default (uniform +-1/sqrt(fan_in)).

    Weights stored as (in_features, out_features); biases as (1, out_features).
    Returned at the ORIGINAL (unpadded) sizes; the wrapper pads them.
    """
    dims = [(D_IN, D_HID), (D_HID, D_HID), (D_HID, D_HID),
            (D_HID, D_HID), (D_HID, D_OUT)]
    params = []
    for fan_in, fan_out in dims:
        key, kw, kb = jax.random.split(key, 3)
        bound = 1.0 / jnp.sqrt(float(fan_in))
        w = jax.random.uniform(kw, (fan_in, fan_out), jnp.float32,
                               minval=-bound, maxval=bound)
        b = jax.random.uniform(kb, (1, fan_out), jnp.float32,
                               minval=-bound, maxval=bound)
        params += [w, b]
    return tuple(params)


def net_cno_reference(x, params):
    (w1, b1, w2, b2, w3, b3, w4, b4, w5, b5) = params
    h = jnp.tanh(x @ w1 + b1)
    h = jnp.tanh(h @ w2 + b2)
    h = jnp.tanh(h @ w3 + b3)
    h = jnp.tanh(h @ w4 + b4)
    h = h @ w5 + b5
    return jnp.concatenate([jnp.abs(h[:, :N_EXP]), h[:, N_EXP:]], axis=1)


if __name__ == "__main__":
    key = jax.random.PRNGKey(0)
    key, kx = jax.random.split(key)

    # Small batch, deliberately NOT a multiple of 8 or the tile: exercises the
    # minimal row padding and the adaptive >=2-step grid (tile=16, Bp=32).
    B = 20
    x = jax.random.normal(kx, (B, D_IN), jnp.float32)
    params = init_params(key)
    ref = net_cno_reference(x, params)

    # Default path: bf16 MXU matmuls, f32 accumulation + f32 bias/tanh.
    out = jax.block_until_ready(net_cno_forward(x, params))
    assert out.shape == (B, D_OUT)
    assert jnp.allclose(out, ref, atol=5e-2, rtol=5e-2), "bf16 mismatch vs reference"

    # Full f32 path (closest to the torch module's numerics; TPU f32 matmul is
    # still not IEEE, hence the slightly relaxed tolerance).
    out_f32 = jax.block_until_ready(net_cno_forward(x, params, use_bf16=False))
    assert out_f32.shape == (B, D_OUT)
    assert jnp.allclose(out_f32, ref, atol=2e-4, rtol=2e-4), "f32 mismatch vs reference"

    # bf16 activations/tanh as well (intended for v6e/v7x; compiles everywhere).
    out_act = jax.block_until_ready(net_cno_forward(x, params, bf16_act=True))
    assert out_act.shape == (B, D_OUT)
    assert jnp.allclose(out_act, ref, atol=1e-1, rtol=1e-1), "bf16-act mismatch vs reference"

    print("KERNEL_OK")
</pallas_src>

<mosaic_0001>
module attributes {stable_mosaic.version = 11 : i64} {
  func.func @_net_cno_kernel(%arg0: i32, %arg1: memref<16x360xf32, #tpu.memory_space<vmem>>, %arg2: memref<360x256xbf16, #tpu.memory_space<vmem>>, %arg3: memref<1x256xf32, #tpu.memory_space<vmem>>, %arg4: memref<256x256xbf16, #tpu.memory_space<vmem>>, %arg5: memref<1x256xf32, #tpu.memory_space<vmem>>, %arg6: memref<256x256xbf16, #tpu.memory_space<vmem>>, %arg7: memref<1x256xf32, #tpu.memory_space<vmem>>, %arg8: memref<256x256xbf16, #tpu.memory_space<vmem>>, %arg9: memref<1x256xf32, #tpu.memory_space<vmem>>, %arg10: memref<256x340xbf16, #tpu.memory_space<vmem>>, %arg11: memref<1x340xf32, #tpu.memory_space<vmem>>, %arg12: memref<16x340xf32, #tpu.memory_space<vmem>>) attributes {dimension_semantics = [#tpu.dimension_semantics<parallel>], iteration_bounds = array<i64: 2>, scalar_prefetch = 0 : i64, scratch_operands = 0 : i64, tpu.core_type = #tpu.core_type<tc>, window_params = [{transform_indices = @transform_0, window_bounds = array<i64: 16, 360>}, {pipeline_mode = #tpu.pipeline_mode<synchronous>, transform_indices = @transform_1, window_bounds = array<i64: 360, 256>}, {pipeline_mode = #tpu.pipeline_mode<synchronous>, transform_indices = @transform_2, window_bounds = array<i64: 1, 256>}, {pipeline_mode = #tpu.pipeline_mode<synchronous>, transform_indices = @transform_3, window_bounds = array<i64: 256, 256>}, {pipeline_mode = #tpu.pipeline_mode<synchronous>, transform_indices = @transform_4, window_bounds = array<i64: 1, 256>}, {pipeline_mode = #tpu.pipeline_mode<synchronous>, transform_indices = @transform_5, window_bounds = array<i64: 256, 256>}, {pipeline_mode = #tpu.pipeline_mode<synchronous>, transform_indices = @transform_6, window_bounds = array<i64: 1, 256>}, {pipeline_mode = #tpu.pipeline_mode<synchronous>, transform_indices = @transform_7, window_bounds = array<i64: 256, 256>}, {pipeline_mode = #tpu.pipeline_mode<synchronous>, transform_indices = @transform_8, window_bounds = array<i64: 1, 256>}, {pipeline_mode = #tpu.pipeline_mode<synchronous>, transform_indices = @transform_9, window_bounds = array<i64: 256, 340>}, {pipeline_mode = #tpu.pipeline_mode<synchronous>, transform_indices = @transform_10, window_bounds = array<i64: 1, 340>}, {transform_indices = @transform_11, window_bounds = array<i64: 16, 340>}]} {
    %c0 = arith.constant 0 : index
    %c0_0 = arith.constant 0 : index
    %0 = vector.load %arg1[%c0, %c0_0] : memref<16x360xf32, #tpu.memory_space<vmem>>, vector<16x360xf32>
    %1 = arith.truncf %0 : vector<16x360xf32> to vector<16x360xbf16>
    %c0_1 = arith.constant 0 : index
    %c0_2 = arith.constant 0 : index
    %2 = vector.load %arg2[%c0_1, %c0_2] : memref<360x256xbf16, #tpu.memory_space<vmem>>, vector<360x256xbf16>
    %cst = arith.constant dense<0.000000e+00> : vector<16x256xf32>
    %3 = tpu.matmul %1, %2, %cst {dimension_numbers = #tpu.dot_dimension_numbers<[1], [0], [0], [1], [0, 0, 1, 1], [], []>} : vector<16x360xbf16>, vector<360x256xbf16>, vector<16x256xf32> -> vector<16x256xf32>
    %c0_3 = arith.constant 0 : index
    %c0_4 = arith.constant 0 : index
    %4 = vector.load %arg3[%c0_3, %c0_4] : memref<1x256xf32, #tpu.memory_space<vmem>>, vector<1x256xf32>
    %5 = vector.broadcast %4 : vector<1x256xf32> to vector<16x256xf32>
    %6 = arith.addf %3, %5 : vector<16x256xf32>
    %7 = math.tanh %6 : vector<16x256xf32>
    %8 = arith.truncf %7 : vector<16x256xf32> to vector<16x256xbf16>
    %c0_5 = arith.constant 0 : index
    %c0_6 = arith.constant 0 : index
    %9 = vector.load %arg4[%c0_5, %c0_6] : memref<256x256xbf16, #tpu.memory_space<vmem>>, vector<256x256xbf16>
    %cst_7 = arith.constant dense<0.000000e+00> : vector<16x256xf32>
    %10 = tpu.matmul %8, %9, %cst_7 {dimension_numbers = #tpu.dot_dimension_numbers<[1], [0], [0], [1], [0, 0, 1, 1], [], []>} : vector<16x256xbf16>, vector<256x256xbf16>, vector<16x256xf32> -> vector<16x256xf32>
    %c0_8 = arith.constant 0 : index
    %c0_9 = arith.constant 0 : index
    %11 = vector.load %arg5[%c0_8, %c0_9] : memref<1x256xf32, #tpu.memory_space<vmem>>, vector<1x256xf32>
    %12 = vector.broadcast %11 : vector<1x256xf32> to vector<16x256xf32>
    %13 = arith.addf %10, %12 : vector<16x256xf32>
    %14 = math.tanh %13 : vector<16x256xf32>
    %15 = arith.truncf %14 : vector<16x256xf32> to vector<16x256xbf16>
    %c0_10 = arith.constant 0 : index
    %c0_11 = arith.constant 0 : index
    %16 = vector.load %arg6[%c0_10, %c0_11] : memref<256x256xbf16, #tpu.memory_space<vmem>>, vector<256x256xbf16>
    %cst_12 = arith.constant dense<0.000000e+00> : vector<16x256xf32>
    %17 = tpu.matmul %15, %16, %cst_12 {dimension_numbers = #tpu.dot_dimension_numbers<[1], [0], [0], [1], [0, 0, 1, 1], [], []>} : vector<16x256xbf16>, vector<256x256xbf16>, vector<16x256xf32> -> vector<16x256xf32>
    %c0_13 = arith.constant 0 : index
    %c0_14 = arith.constant 0 : index
    %18 = vector.load %arg7[%c0_13, %c0_14] : memref<1x256xf32, #tpu.memory_space<vmem>>, vector<1x256xf32>
    %19 = vector.broadcast %18 : vector<1x256xf32> to vector<16x256xf32>
    %20 = arith.addf %17, %19 : vector<16x256xf32>
    %21 = math.tanh %20 : vector<16x256xf32>
    %22 = arith.truncf %21 : vector<16x256xf32> to vector<16x256xbf16>
    %c0_15 = arith.constant 0 : index
    %c0_16 = arith.constant 0 : index
    %23 = vector.load %arg8[%c0_15, %c0_16] : memref<256x256xbf16, #tpu.memory_space<vmem>>, vector<256x256xbf16>
    %cst_17 = arith.constant dense<0.000000e+00> : vector<16x256xf32>
    %24 = tpu.matmul %22, %23, %cst_17 {dimension_numbers = #tpu.dot_dimension_numbers<[1], [0], [0], [1], [0, 0, 1, 1], [], []>} : vector<16x256xbf16>, vector<256x256xbf16>, vector<16x256xf32> -> vector<16x256xf32>
    %c0_18 = arith.constant 0 : index
    %c0_19 = arith.constant 0 : index
    %25 = vector.load %arg9[%c0_18, %c0_19] : memref<1x256xf32, #tpu.memory_space<vmem>>, vector<1x256xf32>
    %26 = vector.broadcast %25 : vector<1x256xf32> to vector<16x256xf32>
    %27 = arith.addf %24, %26 : vector<16x256xf32>
    %28 = math.tanh %27 : vector<16x256xf32>
    %29 = arith.truncf %28 : vector<16x256xf32> to vector<16x256xbf16>
    %c0_20 = arith.constant 0 : index
    %c0_21 = arith.constant 0 : index
    %30 = vector.load %arg10[%c0_20, %c0_21] : memref<256x340xbf16, #tpu.memory_space<vmem>>, vector<256x340xbf16>
    %cst_22 = arith.constant dense<0.000000e+00> : vector<16x340xf32>
    %31 = tpu.matmul %29, %30, %cst_22 {dimension_numbers = #tpu.dot_dimension_numbers<[1], [0], [0], [1], [0, 0, 1, 1], [], []>} : vector<16x256xbf16>, vector<256x340xbf16>, vector<16x340xf32> -> vector<16x340xf32>
    %c0_23 = arith.constant 0 : index
    %c0_24 = arith.constant 0 : index
    %32 = vector.load %arg11[%c0_23, %c0_24] : memref<1x340xf32, #tpu.memory_space<vmem>>, vector<1x340xf32>
    %33 = vector.broadcast %32 : vector<1x340xf32> to vector<16x340xf32>
    %34 = arith.addf %31, %33 : vector<16x340xf32>
    %35 = tpu.iota {dimensions = array<i32: 1>} : vector<16x340xi32>
    %c93_i32 = arith.constant 93 : i32
    %36 = vector.broadcast %c93_i32 : i32 to vector<16x340xi32>
    %37 = arith.cmpi slt, %35, %36 : vector<16x340xi32>
    %38 = math.absf %34 : vector<16x340xf32>
    %39 = arith.select %37, %38, %34 : vector<16x340xi1>, vector<16x340xf32>
    %c0_25 = arith.constant 0 : index
    %c0_26 = arith.constant 0 : index
    %40 = vector.load %arg12[%c0_25, %c0_26] : memref<16x340xf32, #tpu.memory_space<vmem>>, vector<16x340xf32>
    tpu.vector_store %arg12[%c0_25, %c0_26], %39 {strides = array<i32>} : memref<16x340xf32, #tpu.memory_space<vmem>>, vector<16x340xf32>,
    return
  }
  func.func @transform_0(%arg0: i32) -> (i32, i32) {
    %c0_i32 = arith.constant 0 : i32
    %c0_i32_0 = arith.constant 0 : i32
    return %arg0, %c0_i32 : i32, i32
  }
  func.func @transform_1(%arg0: i32) -> (i32, i32) {
    %c0_i32 = arith.constant 0 : i32
    %c0_i32_0 = arith.constant 0 : i32
    %c0_i32_1 = arith.constant 0 : i32
    return %c0_i32, %c0_i32_0 : i32, i32
  }
  func.func @transform_2(%arg0: i32) -> (i32, i32) {
    %c0_i32 = arith.constant 0 : i32
    %c0_i32_0 = arith.constant 0 : i32
    %c0_i32_1 = arith.constant 0 : i32
    return %c0_i32, %c0_i32_0 : i32, i32
  }
  func.func @transform_3(%arg0: i32) -> (i32, i32) {
    %c0_i32 = arith.constant 0 : i32
    %c0_i32_0 = arith.constant 0 : i32
    %c0_i32_1 = arith.constant 0 : i32
    return %c0_i32, %c0_i32_0 : i32, i32
  }
  func.func @transform_4(%arg0: i32) -> (i32, i32) {
    %c0_i32 = arith.constant 0 : i32
    %c0_i32_0 = arith.constant 0 : i32
    %c0_i32_1 = arith.constant 0 : i32
    return %c0_i32, %c0_i32_0 : i32, i32
  }
  func.func @transform_5(%arg0: i32) -> (i32, i32) {
    %c0_i32 = arith.constant 0 : i32
    %c0_i32_0 = arith.constant 0 : i32
    %c0_i32_1 = arith.constant 0 : i32
    return %c0_i32, %c0_i32_0 : i32, i32
  }
  func.func @transform_6(%arg0: i32) -> (i32, i32) {
    %c0_i32 = arith.constant 0 : i32
    %c0_i32_0 = arith.constant 0 : i32
    %c0_i32_1 = arith.constant 0 : i32
    return %c0_i32, %c0_i32_0 : i32, i32
  }
  func.func @transform_7(%arg0: i32) -> (i32, i32) {
    %c0_i32 = arith.constant 0 : i32
    %c0_i32_0 = arith.constant 0 : i32
    %c0_i32_1 = arith.constant 0 : i32
    return %c0_i32, %c0_i32_0 : i32, i32
  }
  func.func @transform_8(%arg0: i32) -> (i32, i32) {
    %c0_i32 = arith.constant 0 : i32
    %c0_i32_0 = arith.constant 0 : i32
    %c0_i32_1 = arith.constant 0 : i32
    return %c0_i32, %c0_i32_0 : i32, i32
  }
  func.func @transform_9(%arg0: i32) -> (i32, i32) {
    %c0_i32 = arith.constant 0 : i32
    %c0_i32_0 = arith.constant 0 : i32
    %c0_i32_1 = arith.constant 0 : i32
    return %c0_i32, %c0_i32_0 : i32, i32
  }
  func.func @transform_10(%arg0: i32) -> (i32, i32) {
    %c0_i32 = arith.constant 0 : i32
    %c0_i32_0 = arith.constant 0 : i32
    %c0_i32_1 = arith.constant 0 : i32
    return %c0_i32, %c0_i32_0 : i32, i32
  }
  func.func @transform_11(%arg0: i32) -> (i32, i32) {
    %c0_i32 = arith.constant 0 : i32
    %c0_i32_0 = arith.constant 0 : i32
    return %arg0, %c0_i32 : i32, i32
  }
}

</mosaic_0001>

<llo_original>
// kernel: net_cno_forward.1
$region0: #{net_cno_forward.1}
  #allocation0 [shape = 'u32[]', space=smem, size = 0x4, offset = 0x4, fixed_abs, tag = 'smem constant byte address 0x4 - core index']
  #allocation1 [shape = 'u32[72,128]{1,0:T(1,128)}', space=vmem, size = 0x9000, scoped, tag = 'internal scratch']
  %s0 = inlined_call_operand.vmem [shape: f32[32,360], index: 0, kind: input, shape index: {}]
  %s1 = inlined_call_operand.vmem [shape: bf16[360,256], index: 1, kind: input, shape index: {}]
  %s2 = inlined_call_operand.vmem [shape: f32[1,256], index: 2, kind: input, shape index: {}]
  %s3 = inlined_call_operand.vmem [shape: bf16[256,256], index: 3, kind: input, shape index: {}]
  %s4 = inlined_call_operand.vmem [shape: f32[1,256], index: 4, kind: input, shape index: {}]
  %s5 = inlined_call_operand.vmem [shape: bf16[256,256], index: 5, kind: input, shape index: {}]
  %s6 = inlined_call_operand.vmem [shape: f32[1,256], index: 6, kind: input, shape index: {}]
  %s7 = inlined_call_operand.vmem [shape: bf16[256,256], index: 7, kind: input, shape index: {}]
  %s8 = inlined_call_operand.vmem [shape: f32[1,256], index: 8, kind: input, shape index: {}]
  %s9 = inlined_call_operand.vmem [shape: bf16[256,340], index: 9, kind: input, shape index: {}]
  %s10 = inlined_call_operand.vmem [shape: f32[1,340], index: 10, kind: input, shape index: {}]
  %s11 = inlined_call_operand.vmem [shape: f32[32,340], index: 11, kind: output, shape index: {}]
  %s12 = sld [smem:[#allocation0]]
  $region77: #{net_cno_forward.1} parent=0
    _
  %s14 = ssub.s32 1, %s12
  %s15 = scalar_select 0, %s14, %s12
  loop: start=0, step=1, limit=4
  $region2: #{net_cno_forward.1} parent=0 // loop_pre_header
    _
  $region3: #{net_cno_forward.1} parent=0 // loop_header
    %s17 = sphi 0, %s21
    %p18 = scmp.ge.s32.totalorder %s17, 4
    %s27 = sphi 0, %s29
    %s30 = sphi 0, %s27
    %s31 = sphi 0, %s30
    %s47 = sphi 0, %s31
    %s51 = sphi 0, %s51
    %s53 = sphi 0, %s51
    %s54 = sphi 0, %s53
    %s68 = sphi 0, %s54
    %s72 = sphi 0, %s72
    %s74 = sphi 0, %s72
    %s75 = sphi 0, %s74
    %s89 = sphi 0, %s75
    %s93 = sphi 0, %s93
    %s95 = sphi 0, %s93
    %s96 = sphi 0, %s95
    %s110 = sphi 0, %s96
    %s114 = sphi 0, %s114
    %s116 = sphi 0, %s114
    %s117 = sphi 0, %s116
    %s131 = sphi 0, %s117
    %s135 = sphi 0, %s135
    %s137 = sphi 0, %s135
    %s138 = sphi 0, %s137
    %s152 = sphi 0, %s138
    %s156 = sphi 0, %s156
    %s158 = sphi 0, %s156
    %s159 = sphi 0, %s158
    %s173 = sphi 0, %s159
    %s177 = sphi 0, %s177
    %s179 = sphi 0, %s177
    %s180 = sphi 0, %s179
    %s194 = sphi 0, %s180
    %s198 = sphi 0, %s198
    %s200 = sphi 0, %s198
    %s201 = sphi 0, %s200
    %s215 = sphi 0, %s201
    %s219 = sphi 0, %s219
    %s221 = sphi 0, %s219
    %s222 = sphi 0, %s221
    %s236 = sphi 0, %s222
    %s240 = sphi 0, %s240
    %s242 = sphi 0, %s240
    %s243 = sphi 0, %s242
    %s257 = sphi 0, %s243
    %s263 = sphi 0, %s265
    %s266 = sphi 0, %s263
    %s267 = sphi 0, %s266
    %s283 = sphi 0, %s267
  $region4: #{net_cno_forward.1} parent=0 // loop_header_branch
    %20 = sbr.rel (%p18) target = $region8
  $region5: #{net_cno_forward.1} parent=0 // loop_body
    %s22 = ssub.s32 %s17, 1
    %s23 = ssub.s32 %s17, 2
    %s24 = sadd.s32 %s17, 1
    %s25 = ssub.s32 %s17, %s24
    %p26 = scmp.eq.s32.totalorder %s25, 0
    %s28 = sadd.s32 %s27, 1
    %s29 = scalar_select %p26, %s27, %s28
    %p32 = pneg %p26
    %p33 = scmp.eq.s32.totalorder %s17, 1
    %p34 = por %p32, %p33
    %p35 = scmp.ne.s32.totalorder %s27, %s30
    %p36 = scmp.eq.s32.totalorder %s17, 0
    %p37 = por %p35, %p36
    %p38 = scmp.ne.s32.totalorder %s27, %s30
    %p39 = scmp.eq.s32.totalorder %s22, 1
    %p40 = por %p38, %p39
    %p41 = scmp.ne.s32.totalorder %s30, %s31
    %p42 = scmp.eq.s32.totalorder %s22, 0
    %p43 = por %p41, %p42
    %p44 = scmp.ne.s32.totalorder %s30, %s31
    %p45 = scmp.eq.s32.totalorder %s23, 1
    %p46 = por %p44, %p45
    %p48 = scmp.ne.s32.totalorder %s31, %s47
    %p49 = scmp.eq.s32.totalorder %s23, 0
    %p50 = por %p48, %p49
    %s52 = sadd.s32 %s51, 1
    %p55 = scmp.eq.s32.totalorder %s17, 1
    %p56 = scmp.ne.s32.totalorder %s51, %s53
    %p57 = scmp.eq.s32.totalorder %s17, 0
    %p58 = por %p56, %p57
    %p59 = scmp.ne.s32.totalorder %s51, %s53
    %p60 = scmp.eq.s32.totalorder %s22, 1
    %p61 = por %p59, %p60
    %p62 = scmp.ne.s32.totalorder %s53, %s54
    %p63 = scmp.eq.s32.totalorder %s22, 0
    %p64 = por %p62, %p63
    %p65 = scmp.ne.s32.totalorder %s53, %s54
    %p66 = scmp.eq.s32.totalorder %s23, 1
    %p67 = por %p65, %p66
    %p69 = scmp.ne.s32.totalorder %s54, %s68
    %p70 = scmp.eq.s32.totalorder %s23, 0
    %p71 = por %p69, %p70
    %s73 = sadd.s32 %s72, 1
    %p76 = scmp.eq.s32.totalorder %s17, 1
    %p77 = scmp.ne.s32.totalorder %s72, %s74
    %p78 = scmp.eq.s32.totalorder %s17, 0
    %p79 = por %p77, %p78
    %p80 = scmp.ne.s32.totalorder %s72, %s74
    %p81 = scmp.eq.s32.totalorder %s22, 1
    %p82 = por %p80, %p81
    %p83 = scmp.ne.s32.totalorder %s74, %s75
    %p84 = scmp.eq.s32.totalorder %s22, 0
    %p85 = por %p83, %p84
    %p86 = scmp.ne.s32.totalorder %s74, %s75
    %p87 = scmp.eq.s32.totalorder %s23, 1
    %p88 = por %p86, %p87
    %p90 = scmp.ne.s32.totalorder %s75, %s89
    %p91 = scmp.eq.s32.totalorder %s23, 0
    %p92 = por %p90, %p91
    %s94 = sadd.s32 %s93, 1
    %p97 = scmp.eq.s32.totalorder %s17, 1
    %p98 = scmp.ne.s32.totalorder %s93, %s95
    %p99 = scmp.eq.s32.totalorder %s17, 0
    %p100 = por %p98, %p99
    %p101 = scmp.ne.s32.totalorder %s93, %s95
    %p102 = scmp.eq.s32.totalorder %s22, 1
    %p103 = por %p101, %p102
    %p104 = scmp.ne.s32.totalorder %s95, %s96
    %p105 = scmp.eq.s32.totalorder %s22, 0
    %p106 = por %p104, %p105
    %p107 = scmp.ne.s32.totalorder %s95, %s96
    %p108 = scmp.eq.s32.totalorder %s23, 1
    %p109 = por %p107, %p108
    %p111 = scmp.ne.s32.totalorder %s96, %s110
    %p112 = scmp.eq.s32.totalorder %s23, 0
    %p113 = por %p111, %p112
    %s115 = sadd.s32 %s114, 1
    %p118 = scmp.eq.s32.totalorder %s17, 1
    %p119 = scmp.ne.s32.totalorder %s114, %s116
    %p120 = scmp.eq.s32.totalorder %s17, 0
    %p121 = por %p119, %p120
    %p122 = scmp.ne.s32.totalorder %s114, %s116
    %p123 = scmp.eq.s32.totalorder %s22, 1
    %p124 = por %p122, %p123
    %p125 = scmp.ne.s32.totalorder %s116, %s117
    %p126 = scmp.eq.s32.totalorder %s22, 0
    %p127 = por %p125, %p126
    %p128 = scmp.ne.s32.totalorder %s116, %s117
    %p129 = scmp.eq.s32.totalorder %s23, 1
    %p130 = por %p128, %p129
    %p132 = scmp.ne.s32.totalorder %s117, %s131
    %p133 = scmp.eq.s32.totalorder %s23, 0
    %p134 = por %p132, %p133
    %s136 = sadd.s32 %s135, 1
    %p139 = scmp.eq.s32.totalorder %s17, 1
    %p140 = scmp.ne.s32.totalorder %s135, %s137
    %p141 = scmp.eq.s32.totalorder %s17, 0
    %p142 = por %p140, %p141
    %p143 = scmp.ne.s32.totalorder %s135, %s137
    %p144 = scmp.eq.s32.totalorder %s22, 1
    %p145 = por %p143, %p144
    %p146 = scmp.ne.s32.totalorder %s137, %s138
    %p147 = scmp.eq.s32.totalorder %s22, 0
    %p148 = por %p146, %p147
    %p149 = scmp.ne.s32.totalorder %s137, %s138
    %p150 = scmp.eq.s32.totalorder %s23, 1
    %p151 = por %p149, %p150
    %p153 = scmp.ne.s32.totalorder %s138, %s152
    %p154 = scmp.eq.s32.totalorder %s23, 0
    %p155 = por %p153, %p154
    %s157 = sadd.s32 %s156, 1
    %p160 = scmp.eq.s32.totalorder %s17, 1
    %p161 = scmp.ne.s32.totalorder %s156, %s158
    %p162 = scmp.eq.s32.totalorder %s17, 0
    %p163 = por %p161, %p162
    %p164 = scmp.ne.s32.totalorder %s156, %s158
    %p165 = scmp.eq.s32.totalorder %s22, 1
    %p166 = por %p164, %p165
    %p167 = scmp.ne.s32.totalorder %s158, %s159
    %p168 = scmp.eq.s32.totalorder %s22, 0
    %p169 = por %p167, %p168
    %p170 = scmp.ne.s32.totalorder %s158, %s159
    %p171 = scmp.eq.s32.totalorder %s23, 1
    %p172 = por %p170, %p171
    %p174 = scmp.ne.s32.totalorder %s159, %s173
    %p175 = scmp.eq.s32.totalorder %s23, 0
    %p176 = por %p174, %p175
    %s178 = sadd.s32 %s177, 1
    %p181 = scmp.eq.s32.totalorder %s17, 1
    %p182 = scmp.ne.s32.totalorder %s177, %s179
    %p183 = scmp.eq.s32.totalorder %s17, 0
    %p184 = por %p182, %p183
    %p185 = scmp.ne.s32.totalorder %s177, %s179
    %p186 = scmp.eq.s32.totalorder %s22, 1
    %p187 = por %p185, %p186
    %p188 = scmp.ne.s32.totalorder %s179, %s180
    %p189 = scmp.eq.s32.totalorder %s22, 0
    %p190 = por %p188, %p189
    %p191 = scmp.ne.s32.totalorder %s179, %s180
    %p192 = scmp.eq.s32.totalorder %s23, 1
    %p193 = por %p191, %p192
    %p195 = scmp.ne.s32.totalorder %s180, %s194
    %p196 = scmp.eq.s32.totalorder %s23, 0
    %p197 = por %p195, %p196
    %s199 = sadd.s32 %s198, 1
    %p202 = scmp.eq.s32.totalorder %s17, 1
    %p203 = scmp.ne.s32.totalorder %s198, %s200
    %p204 = scmp.eq.s32.totalorder %s17, 0
    %p205 = por %p203, %p204
    %p206 = scmp.ne.s32.totalorder %s198, %s200
    %p207 = scmp.eq.s32.totalorder %s22, 1
    %p208 = por %p206, %p207
    %p209 = scmp.ne.s32.totalorder %s200, %s201
    %p210 = scmp.eq.s32.totalorder %s22, 0
    %p211 = por %p209, %p210
    %p212 = scmp.ne.s32.totalorder %s200, %s201
    %p213 = scmp.eq.s32.totalorder %s23, 1
    %p214 = por %p212, %p213
    %p216 = scmp.ne.s32.totalorder %s201, %s215
    %p217 = scmp.eq.s32.totalorder %s23, 0
    %p218 = por %p216, %p217
    %s220 = sadd.s32 %s219, 1
    %p223 = scmp.eq.s32.totalorder %s17, 1
    %p224 = scmp.ne.s32.totalorder %s219, %s221
    %p225 = scmp.eq.s32.totalorder %s17, 0
    %p226 = por %p224, %p225
    %p227 = scmp.ne.s32.totalorder %s219, %s221
    %p228 = scmp.eq.s32.totalorder %s22, 1
    %p229 = por %p227, %p228
    %p230 = scmp.ne.s32.totalorder %s221, %s222
    %p231 = scmp.eq.s32.totalorder %s22, 0
    %p232 = por %p230, %p231
    %p233 = scmp.ne.s32.totalorder %s221, %s222
    %p234 = scmp.eq.s32.totalorder %s23, 1
    %p235 = por %p233, %p234
    %p237 = scmp.ne.s32.totalorder %s222, %s236
    %p238 = scmp.eq.s32.totalorder %s23, 0
    %p239 = por %p237, %p238
    %s241 = sadd.s32 %s240, 1
    %p244 = scmp.eq.s32.totalorder %s17, 1
    %p245 = scmp.ne.s32.totalorder %s240, %s242
    %p246 = scmp.eq.s32.totalorder %s17, 0
    %p247 = por %p245, %p246
    %p248 = scmp.ne.s32.totalorder %s240, %s242
    %p249 = scmp.eq.s32.totalorder %s22, 1
    %p250 = por %p248, %p249
    %p251 = scmp.ne.s32.totalorder %s242, %s243
    %p252 = scmp.eq.s32.totalorder %s22, 0
    %p253 = por %p251, %p252
    %p254 = scmp.ne.s32.totalorder %s242, %s243
    %p255 = scmp.eq.s32.totalorder %s23, 1
    %p256 = por %p254, %p255
    %p258 = scmp.ne.s32.totalorder %s243, %s257
    %p259 = scmp.eq.s32.totalorder %s23, 0
    %p260 = por %p258, %p259
    %s261 = ssub.s32 %s17, %s24
    %p262 = scmp.eq.s32.totalorder %s261, 0
    %s264 = sadd.s32 %s263, 1
    %s265 = scalar_select %p262, %s263, %s264
    %p268 = pneg %p262
    %p269 = scmp.eq.s32.totalorder %s17, 1
    %p270 = por %p268, %p269
    %p271 = scmp.ne.s32.totalorder %s263, %s266
    %p272 = scmp.eq.s32.totalorder %s17, 0
    %p273 = por %p271, %p272
    %p274 = scmp.ne.s32.totalorder %s263, %s266
    %p275 = scmp.eq.s32.totalorder %s22, 1
    %p276 = por %p274, %p275
    %p277 = scmp.ne.s32.totalorder %s266, %s267
    %p278 = scmp.eq.s32.totalorder %s22, 0
    %p279 = por %p277, %p278
    %p280 = scmp.ne.s32.totalorder %s266, %s267
    %p281 = scmp.eq.s32.totalorder %s23, 1
    %p282 = por %p280, %p281
    %p284 = scmp.ne.s32.totalorder %s267, %s283
    %p285 = scmp.eq.s32.totalorder %s23, 0
    %p286 = por %p284, %p285
    %p287 = scmp.le.s32.totalorder 1, %s17
    %p288 = scmp.lt.s32.totalorder %s17, 3
    %p289 = pnand %p287, %p288
    %p290 = pneg %p289
    // Predicated region
    $region9: #{net_cno_forward.1} parent=5 // pred_check
      _
    $region10: #{net_cno_forward.1} parent=5 // pred_check_branch
      %292 = sbr.rel (%p289) target = $region12
    $region11: #{net_cno_forward.1} parent=5 // pred_region
      %s293 = ssub.s32 %s17, 1
      // Predicated region
      $region13: #{net_cno_forward.1} parent=11 // pred_check
        %p294 = pneg %p64
      $region14: #{net_cno_forward.1} parent=11 // pred_check_branch
        %296 = sbr.rel (%p294) target = $region16
      $region15: #{net_cno_forward.1} parent=11 // pred_region
        _
      $region16: #{net_cno_forward.1} parent=11 // pred_fallthru
        _
      // Predicated region
      $region17: #{net_cno_forward.1} parent=11 // pred_check
        %p297 = pneg %p85
      $region18: #{net_cno_forward.1} parent=11 // pred_check_branch
        %299 = sbr.rel (%p297) target = $region20
      $region19: #{net_cno_forward.1} parent=11 // pred_region
        _
      $region20: #{net_cno_forward.1} parent=11 // pred_fallthru
        _
      // Predicated region
      $region21: #{net_cno_forward.1} parent=11 // pred_check
        %p300 = pneg %p106
      $region22: #{net_cno_forward.1} parent=11 // pred_check_branch
        %302 = sbr.rel (%p300) target = $region24
      $region23: #{net_cno_forward.1} parent=11 // pred_region
        _
      $region24: #{net_cno_forward.1} parent=11 // pred_fallthru
        _
      // Predicated region
      $region25: #{net_cno_forward.1} parent=11 // pred_check
        %p303 = pneg %p127
      $region26: #{net_cno_forward.1} parent=11 // pred_check_branch
        %305 = sbr.rel (%p303) target = $region28
      $region27: #{net_cno_forward.1} parent=11 // pred_region
        _
      $region28: #{net_cno_forward.1} parent=11 // pred_fallthru
        _
      // Predicated region
      $region29: #{net_cno_forward.1} parent=11 // pred_check
        %p306 = pneg %p148
      $region30: #{net_cno_forward.1} parent=11 // pred_check_branch
        %308 = sbr.rel (%p306) target = $region32
      $region31: #{net_cno_forward.1} parent=11 // pred_region
        _
      $region32: #{net_cno_forward.1} parent=11 // pred_fallthru
        _
      // Predicated region
      $region33: #{net_cno_forward.1} parent=11 // pred_check
        %p309 = pneg %p169
      $region34: #{net_cno_forward.1} parent=11 // pred_check_branch
        %311 = sbr.rel (%p309) target = $region36
      $region35: #{net_cno_forward.1} parent=11 // pred_region
        _
      $region36: #{net_cno_forward.1} parent=11 // pred_fallthru
        _
      // Predicated region
      $region37: #{net_cno_forward.1} parent=11 // pred_check
        %p312 = pneg %p190
      $region38: #{net_cno_forward.1} parent=11 // pred_check_branch
        %314 = sbr.rel (%p312) target = $region40
      $region39: #{net_cno_forward.1} parent=11 // pred_region
        _
      $region40: #{net_cno_forward.1} parent=11 // pred_fallthru
        _
      // Predicated region
      $region41: #{net_cno_forward.1} parent=11 // pred_check
        %p315 = pneg %p211
      $region42: #{net_cno_forward.1} parent=11 // pred_check_branch
        %317 = sbr.rel (%p315) target = $region44
      $region43: #{net_cno_forward.1} parent=11 // pred_region
        _
      $region44: #{net_cno_forward.1} parent=11 // pred_fallthru
        _
      // Predicated region
      $region45: #{net_cno_forward.1} parent=11 // pred_check
        %p318 = pneg %p232
      $region46: #{net_cno_forward.1} parent=11 // pred_check_branch
        %320 = sbr.rel (%p318) target = $region48
      $region47: #{net_cno_forward.1} parent=11 // pred_region
        _
      $region48: #{net_cno_forward.1} parent=11 // pred_fallthru
        _
      // Predicated region
      $region49: #{net_cno_forward.1} parent=11 // pred_check
        %p321 = pneg %p253
      $region50: #{net_cno_forward.1} parent=11 // pred_check_branch
        %323 = sbr.rel (%p321) target = $region52
      $region51: #{net_cno_forward.1} parent=11 // pred_region
        _
      $region52: #{net_cno_forward.1} parent=11 // pred_fallthru
        _
    $region12: #{net_cno_forward.1} parent=5 // pred_fallthru
      _
    %p324 = scmp.lt.s32.totalorder %s17, 2
    // Predicated region
    $region53: #{net_cno_forward.1} parent=5 // pred_check
      %p325 = pneg %p324
    $region54: #{net_cno_forward.1} parent=5 // pred_check_branch
      %327 = sbr.rel (%p325) target = $region56
    $region55: #{net_cno_forward.1} parent=5 // pred_region
      // Predicated region
      $region57: #{net_cno_forward.1} parent=55 // pred_check
        %p328 = pneg %p37
      $region58: #{net_cno_forward.1} parent=55 // pred_check_branch
        %330 = sbr.rel (%p328) target = $region60
      $region59: #{net_cno_forward.1} parent=55 // pred_region
        %s331 = smul.u32 2, %s17
        %p332 = scmp.lt.s32.totalorder %s331, 3
        %s333 = scalar_select %p332, %s331, 3
        %s334 = smul.addr %s333, 3
        %s335 = smul.addr %s334, 8
        %s336 = scalar_lea.vmem %s0, %s335
        %s337 = smul.u32 2, %s17
      $region60: #{net_cno_forward.1} parent=55 // pred_fallthru
        _
    $region56: #{net_cno_forward.1} parent=5 // pred_fallthru
      _
    %p338 = scmp.le.s32.totalorder 1, %s17
    %p339 = scmp.lt.s32.totalorder %s17, 3
    %p340 = pnand %p338, %p339
    %p341 = pneg %p340
    // Predicated region
    $region61: #{net_cno_forward.1} parent=5 // pred_check
      _
    $region62: #{net_cno_forward.1} parent=5 // pred_check_branch
      %343 = sbr.rel (%p340) target = $region64
    $region63: #{net_cno_forward.1} parent=5 // pred_region
      %s344 = ssub.s32 %s17, 1
      %s345 = smul.u32 2, %s22
      %p346 = scmp.lt.s32.totalorder %s345, 3
      %s347 = scalar_select %p346, %s345, 3
      %s348 = smul.addr %s347, 3
      %s349 = smul.addr %s348, 8
      %s350 = scalar_lea.vmem %s0, %s349
      %p351 = pneg %p43
      %p352 = pneg %p40
      %p353 = pneg %p64
      %p354 = pneg %p61
      %p355 = pneg %p85
      %p356 = pneg %p82
      %p357 = pneg %p106
      %p358 = pneg %p103
      %p359 = pneg %p127
      %p360 = pneg %p124
      %p361 = pneg %p148
      %p362 = pneg %p145
      %p363 = pneg %p169
      %p364 = pneg %p166
      %p365 = pneg %p190
      %p366 = pneg %p187
      %p367 = pneg %p211
      %p368 = pneg %p208
      %p369 = pneg %p232
      %p370 = pneg %p229
      %p371 = pneg %p253
      %p372 = pneg %p250
      %p373 = pneg %p279
      %p374 = pneg %p276
      %s375 = smul.u32 2, %s22
      %p376 = scmp.lt.s32.totalorder %s375, 3
      %s377 = scalar_select %p376, %s375, 3
      %s378 = smul.addr %s377, 3
      %s379 = smul.addr %s378, 8
      %s380 = scalar_lea.vmem %s11, %s379
      %s381 = smul.u32 2, %s22
      %p382 = scmp.lt.s32.totalorder %s381, 3
      %s383 = scalar_select %p382, %s381, 3
      %s384 = smul.addr %s383, 3
      %s385 = smul.addr %s384, 8
      %s386 = scalar_lea.vmem %s0, %s385
      %s387 = smul.u32 2, %s22
      %s388 = smul.u32 2, %s22
      %p389 = scmp.lt.s32.totalorder %s388, 3
      %s390 = scalar_select %p389, %s388, 3
      %s391 = smul.addr %s390, 3
      %s392 = smul.addr %s391, 8
      %s393 = scalar_lea.vmem %s11, %s392
      %s394 = smul.u32 2, %s22
      %v396 = vld [vmem:[%s386] sm:$0xff]
      %v397 = vld [vmem:[%s386 + $0x8] sm:$0xff]
      %v398 = vld [vmem:[%s386 + $0x10] sm:$0xff]
      %v399 = vld [vmem:[%s386 + $0x18] sm:$0xff]
      %v400 = vld [vmem:[%s386 + $0x20] sm:$0xff]
      %v401 = vld [vmem:[%s386 + $0x28] sm:$0xff]
      %v402 = vpack.c.bf16 %v399, %v396
      %v403 = vpack.c.bf16 %v400, %v397
      %v404 = vpack.c.bf16 %v401, %v398
      %v405 = vld [vmem:[%s1] sm:$0xff]
      %v406 = vld [vmem:[%s1 + $0x8] sm:$0xff]
      %v407 = vld [vmem:[%s1 + $0x10] sm:$0xff]
      %v408 = vld [vmem:[%s1 + $0x18] sm:$0xff]
      %v409 = vld [vmem:[%s1 + $0x20] sm:$0xff]
      %v410 = vld [vmem:[%s1 + $0x28] sm:$0xff]
      %v411 = vld [vmem:[%s1 + $0x30] sm:$0xff]
      %v412 = vld [vmem:[%s1 + $0x38] sm:$0xff]
      %v413 = vld [vmem:[%s1 + $0x40] sm:$0xff]
      %v414 = vld [vmem:[%s1 + $0x48] sm:$0xff]
      %v415 = vld [vmem:[%s1 + $0x50] sm:$0xff]
      %v416 = vld [vmem:[%s1 + $0x58] sm:$0xff]
      %v417 = vld [vmem:[%s1 + $0x60] sm:$0xff]
      %v418 = vld [vmem:[%s1 + $0x68] sm:$0xff]
      %v419 = vld [vmem:[%s1 + $0x70] sm:$0xff]
      %v420 = vld [vmem:[%s1 + $0x78] sm:$0xff]
      %v421 = vld [vmem:[%s1 + $0x80] sm:$0xff]
      %v422 = vld [vmem:[%s1 + $0x88] sm:$0xff]
      %v423 = vld [vmem:[%s1 + $0x90] sm:$0xff]
      %v424 = vld [vmem:[%s1 + $0x98] sm:$0xff]
      %v425 = vld [vmem:[%s1 + $0xa0] sm:$0xff]
      %v426 = vld [vmem:[%s1 + $0xa8] sm:$0xff]
      %v427 = vld [vmem:[%s1 + $0xb0] sm:$0xff]
      %v428 = vld [vmem:[%s1 + $0xb8] sm:$0xff]
      %v429 = vld [vmem:[%s1 + $0xc0] sm:$0xff]
      %v430 = vld [vmem:[%s1 + $0xc8] sm:$0xff]
      %v431 = vld [vmem:[%s1 + $0xd0] sm:$0xff]
      %v432 = vld [vmem:[%s1 + $0xd8] sm:$0xff]
      %v433 = vld [vmem:[%s1 + $0xe0] sm:$0xff]
      %v434 = vld [vmem:[%s1 + $0xe8] sm:$0xff]
      %v435 = vld [vmem:[%s1 + $0xf0] sm:$0xff]
      %v436 = vld [vmem:[%s1 + $0xf8] sm:$0xff]
      %v437 = vld [vmem:[%s1 + $0x100] sm:$0xff]
      %v438 = vld [vmem:[%s1 + $0x108] sm:$0xff]
      %v439 = vld [vmem:[%s1 + $0x110] sm:$0xff]
      %v440 = vld [vmem:[%s1 + $0x118] sm:$0xff]
      %v441 = vld [vmem:[%s1 + $0x120] sm:$0xff]
      %v442 = vld [vmem:[%s1 + $0x128] sm:$0xff]
      %v443 = vld [vmem:[%s1 + $0x130] sm:$0xff]
      %v444 = vld [vmem:[%s1 + $0x138] sm:$0xff]
      %v445 = vld [vmem:[%s1 + $0x140] sm:$0xff]
      %v446 = vld [vmem:[%s1 + $0x148] sm:$0xff]
      %v447 = vld [vmem:[%s1 + $0x150] sm:$0xff]
      %v448 = vld [vmem:[%s1 + $0x158] sm:$0xff]
      %v449 = vld [vmem:[%s1 + $0x160] sm:$0xff]
      %v450 = vld [vmem:[%s2] sm:$0x3]
      %v452 = vperm.slane %v450, 0
      %v453 = vperm.slane %v450, 1
      %v501 = vunpack.c.l.b16 %v405
      %v502 = vunpack.c.h.b16 %v405
      %v503 = vunpack.c.l.b16 %v406
      %v504 = vunpack.c.h.b16 %v406
      %v505 = vunpack.c.l.b16 %v407
      %v506 = vunpack.c.h.b16 %v407
      %v507 = vunpack.c.l.b16 %v408
      %v508 = vunpack.c.h.b16 %v408
      %v509 = vunpack.c.l.b16 %v409
      %v510 = vunpack.c.h.b16 %v409
      %v511 = vunpack.c.l.b16 %v410
      %v512 = vunpack.c.h.b16 %v410
      %v513 = vunpack.c.l.b16 %v411
      %v514 = vunpack.c.h.b16 %v411
      %v515 = vunpack.c.l.b16 %v412
      %v516 = vunpack.c.h.b16 %v412
      %v517 = vunpack.c.l.b16 %v413
      %v518 = vunpack.c.h.b16 %v413
      %v519 = vunpack.c.l.b16 %v414
      %v520 = vunpack.c.h.b16 %v414
      %v521 = vunpack.c.l.b16 %v415
      %v522 = vunpack.c.h.b16 %v415
      %v523 = vunpack.c.l.b16 %v416
      %v524 = vunpack.c.h.b16 %v416
      %v525 = vunpack.c.l.b16 %v417
      %v526 = vunpack.c.h.b16 %v417
      %v527 = vunpack.c.l.b16 %v418
      %v528 = vunpack.c.h.b16 %v418
      %v529 = vunpack.c.l.b16 %v419
      %v530 = vunpack.c.h.b16 %v419
      %v531 = vunpack.c.l.b16 %v420
      %v532 = vunpack.c.h.b16 %v420
      %v533 = vunpack.c.l.b16 %v421
      %v534 = vunpack.c.h.b16 %v421
      %v535 = vunpack.c.l.b16 %v422
      %v536 = vunpack.c.h.b16 %v422
      %v537 = vunpack.c.l.b16 %v423
      %v538 = vunpack.c.h.b16 %v423
      %v539 = vunpack.c.l.b16 %v424
      %v540 = vunpack.c.h.b16 %v424
      %v541 = vunpack.c.l.b16 %v425
      %v542 = vunpack.c.h.b16 %v425
      %v543 = vunpack.c.l.b16 %v426
      %v544 = vunpack.c.h.b16 %v426
      %v545 = vunpack.c.l.b16 %v427
      %v546 = vunpack.c.h.b16 %v427
      %v547 = vunpack.c.l.b16 %v428
      %v548 = vunpack.c.h.b16 %v428
      %v549 = vunpack.c.l.b16 %v429
      %v550 = vunpack.c.h.b16 %v429
      %v551 = vunpack.c.l.b16 %v430
      %v552 = vunpack.c.h.b16 %v430
      %v553 = vunpack.c.l.b16 %v431
      %v554 = vunpack.c.h.b16 %v431
      %v555 = vunpack.c.l.b16 %v432
      %v556 = vunpack.c.h.b16 %v432
      %v557 = vunpack.c.l.b16 %v433
      %v558 = vunpack.c.h.b16 %v433
      %v559 = vunpack.c.l.b16 %v434
      %v560 = vunpack.c.h.b16 %v434
      %v561 = vunpack.c.l.b16 %v435
      %v562 = vunpack.c.h.b16 %v435
      %v563 = vunpack.c.l.b16 %v436
      %v564 = vunpack.c.h.b16 %v436
      %v565 = vunpack.c.l.b16 %v437
      %v566 = vunpack.c.h.b16 %v437
      %v567 = vunpack.c.l.b16 %v438
      %v568 = vunpack.c.h.b16 %v438
      %v569 = vunpack.c.l.b16 %v439
      %v570 = vunpack.c.h.b16 %v439
      %v571 = vunpack.c.l.b16 %v440
      %v572 = vunpack.c.h.b16 %v440
      %v573 = vunpack.c.l.b16 %v441
      %v574 = vunpack.c.h.b16 %v441
      %v575 = vunpack.c.l.b16 %v442
      %v576 = vunpack.c.h.b16 %v442
      %v577 = vunpack.c.l.b16 %v443
      %v578 = vunpack.c.h.b16 %v443
      %v579 = vunpack.c.l.b16 %v444
      %v580 = vunpack.c.h.b16 %v444
      %v581 = vunpack.c.l.b16 %v445
      %v582 = vunpack.c.h.b16 %v445
      %v583 = vunpack.c.l.b16 %v446
      %v584 = vunpack.c.h.b16 %v446
      %v585 = vunpack.c.l.b16 %v447
      %v586 = vunpack.c.h.b16 %v447
      %v587 = vunpack.c.l.b16 %v448
      %v588 = vunpack.c.h.b16 %v448
      %v589 = vunpack.c.l.b16 %v449
      %v590 = vunpack.c.h.b16 %v449
      %v591 = vpack.c.b16 %v503, %v501
      %v592 = vpack.c.b16 %v504, %v502
      %v593 = vpack.c.b16 %v507, %v505
      %v594 = vpack.c.b16 %v508, %v506
      %v595 = vpack.c.b16 %v511, %v509
      %v596 = vpack.c.b16 %v512, %v510
      %v597 = vpack.c.b16 %v515, %v513
      %v598 = vpack.c.b16 %v516, %v514
      %v599 = vpack.c.b16 %v519, %v517
      %v600 = vpack.c.b16 %v520, %v518
      %v601 = vpack.c.b16 %v523, %v521
      %v602 = vpack.c.b16 %v524, %v522
      %v603 = vpack.c.b16 %v527, %v525
      %v604 = vpack.c.b16 %v528, %v526
      %v605 = vpack.c.b16 %v531, %v529
      %v606 = vpack.c.b16 %v532, %v530
      %v607 = vpack.c.b16 %v535, %v533
      %v608 = vpack.c.b16 %v536, %v534
      %v609 = vpack.c.b16 %v539, %v537
      %v610 = vpack.c.b16 %v540, %v538
      %v611 = vpack.c.b16 %v543, %v541
      %v612 = vpack.c.b16 %v544, %v542
      %v613 = vpack.c.b16 %v547, %v545
      %v614 = vpack.c.b16 %v548, %v546
      %v615 = vpack.c.b16 %v551, %v549
      %v616 = vpack.c.b16 %v552, %v550
      %v617 = vpack.c.b16 %v555, %v553
      %v618 = vpack.c.b16 %v556, %v554
      %v619 = vpack.c.b16 %v559, %v557
      %v620 = vpack.c.b16 %v560, %v558
      %v621 = vpack.c.b16 %v563, %v561
      %v622 = vpack.c.b16 %v564, %v562
      %v623 = vpack.c.b16 %v567, %v565
      %v624 = vpack.c.b16 %v568, %v566
      %v625 = vpack.c.b16 %v571, %v569
      %v626 = vpack.c.b16 %v572, %v570
      %v627 = vpack.c.b16 %v575, %v573
      %v628 = vpack.c.b16 %v576, %v574
      %v629 = vpack.c.b16 %v579, %v577
      %v630 = vpack.c.b16 %v580, %v578
      %v631 = vpack.c.b16 %v583, %v581
      %v632 = vpack.c.b16 %v584, %v582
      %v633 = vpack.c.b16 %v587, %v585
      %v634 = vpack.c.b16 %v588, %v586
      %v635 = vpack.c.b16 %v589, %v589
      %v636 = vpack.c.b16 %v590, %v590
      %vm681 = vcmask 850944
      %v683 = vsel %vm681, %v404, 0
      %vm685 = vcmask 1043456
      %v687 = vsel %vm685, %v635, 0
      %v690 = vsel %vm685, %v636, 0
      %692 = vmatpush.bf16.msra.mxu0 %v605
      %693 = vmatpush.bf16.msra.mxu0 %v603
      %694 = vmatpush.bf16.msra.mxu0 %v601
      %695 = vmatpush.bf16.msra.mxu0 %v599
      %696 = vmatpush.bf16.msra.mxu0 %v597
      %697 = vmatpush.bf16.msra.mxu0 %v595
      %698 = vmatpush.bf16.msra.mxu0 %v593
      %699 = vmatpush.bf16.msra.mxu0 %v591
      %700 = vmatmul.bf16.gmra.mxu0 %v402
      %v701 = vpop.f32.mrf.mxu0
      %v702 = vadd.f32 %v452, %v701
      %v703 = vpop.f32.mrf.mxu0
      %v704 = vadd.f32 %v452, %v703
      %705 = vdwg.mxu0
      %706 = vmatpush.bf16.msra.mxu0 %v621
      %707 = vmatpush.bf16.msra.mxu0 %v619
      %708 = vmatpush.bf16.msra.mxu0 %v617
      %709 = vmatpush.bf16.msra.mxu0 %v615
      %710 = vmatpush.bf16.msra.mxu0 %v613
      %711 = vmatpush.bf16.msra.mxu0 %v611
      %712 = vmatpush.bf16.msra.mxu0 %v609
      %713 = vmatpush.bf16.msra.mxu0 %v607
      %714 = vmatmul.bf16.gmra.mxu0 %v403
      %v715 = vpop.f32.mrf.mxu0
      %v716 = vadd.f32 %v702, %v715
      %v717 = vpop.f32.mrf.mxu0
      %v718 = vadd.f32 %v704, %v717
      %719 = vdwg.mxu0
      %720 = vmatpush.bf16.msra.mxu0 0
      %721 = vmatpush.bf16.msra.mxu0 %v687
      %722 = vmatpush.bf16.msra.mxu0 %v633
      %723 = vmatpush.bf16.msra.mxu0 %v631
      %724 = vmatpush.bf16.msra.mxu0 %v629
      %725 = vmatpush.bf16.msra.mxu0 %v627
      %726 = vmatpush.bf16.msra.mxu0 %v625
      %727 = vmatpush.bf16.msra.mxu0 %v623
      %728 = vmatmul.bf16.gmra.mxu0 %v683
      %v729 = vpop.f32.mrf.mxu0
      %v730 = vadd.f32 %v716, %v729
      %v731 = vpop.f32.mrf.mxu0
      %v732 = vadd.f32 %v718, %v731
      %733 = vdwg.mxu0
      %734 = vmatpush.bf16.msra.mxu0 %v606
      %735 = vmatpush.bf16.msra.mxu0 %v604
      %736 = vmatpush.bf16.msra.mxu0 %v602
      %737 = vmatpush.bf16.msra.mxu0 %v600
      %738 = vmatpush.bf16.msra.mxu0 %v598
      %739 = vmatpush.bf16.msra.mxu0 %v596
      %740 = vmatpush.bf16.msra.mxu0 %v594
      %741 = vmatpush.bf16.msra.mxu0 %v592
      %742 = vmatmul.bf16.gmra.mxu0 %v402
      %v743 = vpop.f32.mrf.mxu0
      %v744 = vadd.f32 %v453, %v743
      %v745 = vpop.f32.mrf.mxu0
      %v746 = vadd.f32 %v453, %v745
      %747 = vdwg.mxu0
      %748 = vmatpush.bf16.msra.mxu0 %v622
      %749 = vmatpush.bf16.msra.mxu0 %v620
      %750 = vmatpush.bf16.msra.mxu0 %v618
      %751 = vmatpush.bf16.msra.mxu0 %v616
      %752 = vmatpush.bf16.msra.mxu0 %v614
      %753 = vmatpush.bf16.msra.mxu0 %v612
      %754 = vmatpush.bf16.msra.mxu0 %v610
      %755 = vmatpush.bf16.msra.mxu0 %v608
      %756 = vmatmul.bf16.gmra.mxu0 %v403
      %v757 = vpop.f32.mrf.mxu0
      %v758 = vadd.f32 %v744, %v757
      %v759 = vpop.f32.mrf.mxu0
      %v760 = vadd.f32 %v746, %v759
      %761 = vdwg.mxu0
      %762 = vmatpush.bf16.msra.mxu0 0
      %763 = vmatpush.bf16.msra.mxu0 %v690
      %764 = vmatpush.bf16.msra.mxu0 %v634
      %765 = vmatpush.bf16.msra.mxu0 %v632
      %766 = vmatpush.bf16.msra.mxu0 %v630
      %767 = vmatpush.bf16.msra.mxu0 %v628
      %768 = vmatpush.bf16.msra.mxu0 %v626
      %769 = vmatpush.bf16.msra.mxu0 %v624
      %770 = vmatmul.bf16.gmra.mxu0 %v683
      %v771 = vpop.f32.mrf.mxu0
      %v772 = vadd.f32 %v758, %v771
      %v773 = vpop.f32.mrf.mxu0
      %v774 = vadd.f32 %v760, %v773
      %775 = vdwg.mxu0
      %v776 = vtanh.pop %v730
      %v777 = vtanh.pop %v772
      %v778 = vtanh.pop %v732
      %v779 = vtanh.pop %v774
      %v780 = vpack.c.bf16 %v778, %v776
      %v781 = vpack.c.bf16 %v779, %v777
      %v782 = vld [vmem:[%s3] sm:$0xff]
      %v783 = vld [vmem:[%s3 + $0x8] sm:$0xff]
      %v784 = vld [vmem:[%s3 + $0x10] sm:$0xff]
      %v785 = vld [vmem:[%s3 + $0x18] sm:$0xff]
      %v786 = vld [vmem:[%s3 + $0x20] sm:$0xff]
      %v787 = vld [vmem:[%s3 + $0x28] sm:$0xff]
      %v788 = vld [vmem:[%s3 + $0x30] sm:$0xff]
      %v789 = vld [vmem:[%s3 + $0x38] sm:$0xff]
      %v790 = vld [vmem:[%s3 + $0x40] sm:$0xff]
      %v791 = vld [vmem:[%s3 + $0x48] sm:$0xff]
      %v792 = vld [vmem:[%s3 + $0x50] sm:$0xff]
      %v793 = vld [vmem:[%s3 + $0x58] sm:$0xff]
      %v794 = vld [vmem:[%s3 + $0x60] sm:$0xff]
      %v795 = vld [vmem:[%s3 + $0x68] sm:$0xff]
      %v796 = vld [vmem:[%s3 + $0x70] sm:$0xff]
      %v797 = vld [vmem:[%s3 + $0x78] sm:$0xff]
      %v798 = vld [vmem:[%s3 + $0x80] sm:$0xff]
      %v799 = vld [vmem:[%s3 + $0x88] sm:$0xff]
      %v800 = vld [vmem:[%s3 + $0x90] sm:$0xff]
      %v801 = vld [vmem:[%s3 + $0x98] sm:$0xff]
      %v802 = vld [vmem:[%s3 + $0xa0] sm:$0xff]
      %v803 = vld [vmem:[%s3 + $0xa8] sm:$0xff]
      %v804 = vld [vmem:[%s3 + $0xb0] sm:$0xff]
      %v805 = vld [vmem:[%s3 + $0xb8] sm:$0xff]
      %v806 = vld [vmem:[%s3 + $0xc0] sm:$0xff]
      %v807 = vld [vmem:[%s3 + $0xc8] sm:$0xff]
      %v808 = vld [vmem:[%s3 + $0xd0] sm:$0xff]
      %v809 = vld [vmem:[%s3 + $0xd8] sm:$0xff]
      %v810 = vld [vmem:[%s3 + $0xe0] sm:$0xff]
      %v811 = vld [vmem:[%s3 + $0xe8] sm:$0xff]
      %v812 = vld [vmem:[%s3 + $0xf0] sm:$0xff]
      %v813 = vld [vmem:[%s3 + $0xf8] sm:$0xff]
      %v814 = vld [vmem:[%s4] sm:$0x3]
      %v816 = vperm.slane %v814, 0
      %v817 = vperm.slane %v814, 1
      %v852 = vunpack.c.l.b16 %v782
      %v853 = vunpack.c.h.b16 %v782
      %v854 = vunpack.c.l.b16 %v783
      %v855 = vunpack.c.h.b16 %v783
      %v856 = vunpack.c.l.b16 %v784
      %v857 = vunpack.c.h.b16 %v784
      %v858 = vunpack.c.l.b16 %v785
      %v859 = vunpack.c.h.b16 %v785
      %v860 = vunpack.c.l.b16 %v786
      %v861 = vunpack.c.h.b16 %v786
      %v862 = vunpack.c.l.b16 %v787
      %v863 = vunpack.c.h.b16 %v787
      %v864 = vunpack.c.l.b16 %v788
      %v865 = vunpack.c.h.b16 %v788
      %v866 = vunpack.c.l.b16 %v789
      %v867 = vunpack.c.h.b16 %v789
      %v868 = vunpack.c.l.b16 %v790
      %v869 = vunpack.c.h.b16 %v790
      %v870 = vunpack.c.l.b16 %v791
      %v871 = vunpack.c.h.b16 %v791
      %v872 = vunpack.c.l.b16 %v792
      %v873 = vunpack.c.h.b16 %v792
      %v874 = vunpack.c.l.b16 %v793
      %v875 = vunpack.c.h.b16 %v793
      %v876 = vunpack.c.l.b16 %v794
      %v877 = vunpack.c.h.b16 %v794
      %v878 = vunpack.c.l.b16 %v795
      %v879 = vunpack.c.h.b16 %v795
      %v880 = vunpack.c.l.b16 %v796
      %v881 = vunpack.c.h.b16 %v796
      %v882 = vunpack.c.l.b16 %v797
      %v883 = vunpack.c.h.b16 %v797
      %v884 = vunpack.c.l.b16 %v798
      %v885 = vunpack.c.h.b16 %v798
      %v886 = vunpack.c.l.b16 %v799
      %v887 = vunpack.c.h.b16 %v799
      %v888 = vunpack.c.l.b16 %v800
      %v889 = vunpack.c.h.b16 %v800
      %v890 = vunpack.c.l.b16 %v801
      %v891 = vunpack.c.h.b16 %v801
      %v892 = vunpack.c.l.b16 %v802
      %v893 = vunpack.c.h.b16 %v802
      %v894 = vunpack.c.l.b16 %v803
      %v895 = vunpack.c.h.b16 %v803
      %v896 = vunpack.c.l.b16 %v804
      %v897 = vunpack.c.h.b16 %v804
      %v898 = vunpack.c.l.b16 %v805
      %v899 = vunpack.c.h.b16 %v805
      %v900 = vunpack.c.l.b16 %v806
      %v901 = vunpack.c.h.b16 %v806
      %v902 = vunpack.c.l.b16 %v807
      %v903 = vunpack.c.h.b16 %v807
      %v904 = vunpack.c.l.b16 %v808
      %v905 = vunpack.c.h.b16 %v808
      %v906 = vunpack.c.l.b16 %v809
      %v907 = vunpack.c.h.b16 %v809
      %v908 = vunpack.c.l.b16 %v810
      %v909 = vunpack.c.h.b16 %v810
      %v910 = vunpack.c.l.b16 %v811
      %v911 = vunpack.c.h.b16 %v811
      %v912 = vunpack.c.l.b16 %v812
      %v913 = vunpack.c.h.b16 %v812
      %v914 = vunpack.c.l.b16 %v813
      %v915 = vunpack.c.h.b16 %v813
      %v916 = vpack.c.b16 %v854, %v852
      %v917 = vpack.c.b16 %v855, %v853
      %v918 = vpack.c.b16 %v858, %v856
      %v919 = vpack.c.b16 %v859, %v857
      %v920 = vpack.c.b16 %v862, %v860
      %v921 = vpack.c.b16 %v863, %v861
      %v922 = vpack.c.b16 %v866, %v864
      %v923 = vpack.c.b16 %v867, %v865
      %v924 = vpack.c.b16 %v870, %v868
      %v925 = vpack.c.b16 %v871, %v869
      %v926 = vpack.c.b16 %v874, %v872
      %v927 = vpack.c.b16 %v875, %v873
      %v928 = vpack.c.b16 %v878, %v876
      %v929 = vpack.c.b16 %v879, %v877
      %v930 = vpack.c.b16 %v882, %v880
      %v931 = vpack.c.b16 %v883, %v881
      %v932 = vpack.c.b16 %v886, %v884
      %v933 = vpack.c.b16 %v887, %v885
      %v934 = vpack.c.b16 %v890, %v888
      %v935 = vpack.c.b16 %v891, %v889
      %v936 = vpack.c.b16 %v894, %v892
      %v937 = vpack.c.b16 %v895, %v893
      %v938 = vpack.c.b16 %v898, %v896
      %v939 = vpack.c.b16 %v899, %v897
      %v940 = vpack.c.b16 %v902, %v900
      %v941 = vpack.c.b16 %v903, %v901
      %v942 = vpack.c.b16 %v906, %v904
      %v943 = vpack.c.b16 %v907, %v905
      %v944 = vpack.c.b16 %v910, %v908
      %v945 = vpack.c.b16 %v911, %v909
      %v946 = vpack.c.b16 %v914, %v912
      %v947 = vpack.c.b16 %v915, %v913
      %980 = vmatpush.bf16.msra.mxu0 %v930
      %981 = vmatpush.bf16.msra.mxu0 %v928
      %982 = vmatpush.bf16.msra.mxu0 %v926
      %983 = vmatpush.bf16.msra.mxu0 %v924
      %984 = vmatpush.bf16.msra.mxu0 %v922
      %985 = vmatpush.bf16.msra.mxu0 %v920
      %986 = vmatpush.bf16.msra.mxu0 %v918
      %987 = vmatpush.bf16.msra.mxu0 %v916
      %988 = vmatmul.bf16.gmra.mxu0 %v780
      %v989 = vpop.f32.mrf.mxu0
      %v990 = vadd.f32 %v816, %v989
      %v991 = vpop.f32.mrf.mxu0
      %v992 = vadd.f32 %v816, %v991
      %993 = vdwg.mxu0
      %994 = vmatpush.bf16.msra.mxu0 %v946
      %995 = vmatpush.bf16.msra.mxu0 %v944
      %996 = vmatpush.bf16.msra.mxu0 %v942
      %997 = vmatpush.bf16.msra.mxu0 %v940
      %998 = vmatpush.bf16.msra.mxu0 %v938
      %999 = vmatpush.bf16.msra.mxu0 %v936
      %1000 = vmatpush.bf16.msra.mxu0 %v934
      %1001 = vmatpush.bf16.msra.mxu0 %v932
      %1002 = vmatmul.bf16.gmra.mxu0 %v781
      %v1003 = vpop.f32.mrf.mxu0
      %v1004 = vadd.f32 %v990, %v1003
      %v1005 = vpop.f32.mrf.mxu0
      %v1006 = vadd.f32 %v992, %v1005
      %1007 = vdwg.mxu0
      %1008 = vmatpush.bf16.msra.mxu0 %v931
      %1009 = vmatpush.bf16.msra.mxu0 %v929
      %1010 = vmatpush.bf16.msra.mxu0 %v927
      %1011 = vmatpush.bf16.msra.mxu0 %v925
      %1012 = vmatpush.bf16.msra.mxu0 %v923
      %1013 = vmatpush.bf16.msra.mxu0 %v921
      %1014 = vmatpush.bf16.msra.mxu0 %v919
      %1015 = vmatpush.bf16.msra.mxu0 %v917
      %1016 = vmatmul.bf16.gmra.mxu0 %v780
      %v1017 = vpop.f32.mrf.mxu0
      %v1018 = vadd.f32 %v817, %v1017
      %v1019 = vpop.f32.mrf.mxu0
      %v1020 = vadd.f32 %v817, %v1019
      %1021 = vdwg.mxu0
      %1022 = vmatpush.bf16.msra.mxu0 %v947
      %1023 = vmatpush.bf16.msra.mxu0 %v945
      %1024 = vmatpush.bf16.msra.mxu0 %v943
      %1025 = vmatpush.bf16.msra.mxu0 %v941
      %1026 = vmatpush.bf16.msra.mxu0 %v939
      %1027 = vmatpush.bf16.msra.mxu0 %v937
      %1028 = vmatpush.bf16.msra.mxu0 %v935
      %1029 = vmatpush.bf16.msra.mxu0 %v933
      %1030 = vmatmul.bf16.gmra.mxu0 %v781
      %v1031 = vpop.f32.mrf.mxu0
      %v1032 = vadd.f32 %v1018, %v1031
      %v1033 = vpop.f32.mrf.mxu0
      %v1034 = vadd.f32 %v1020, %v1033
      %1035 = vdwg.mxu0
      %v1036 = vtanh.pop %v1004
      %v1037 = vtanh.pop %v1032
      %v1038 = vtanh.pop %v1006
      %v1039 = vtanh.pop %v1034
      %v1040 = vpack.c.bf16 %v1038, %v1036
      %v1041 = vpack.c.bf16 %v1039, %v1037
      %v1042 = vld [vmem:[%s5] sm:$0xff]
      %v1043 = vld [vmem:[%s5 + $0x8] sm:$0xff]
      %v1044 = vld [vmem:[%s5 + $0x10] sm:$0xff]
      %v1045 = vld [vmem:[%s5 + $0x18] sm:$0xff]
      %v1046 = vld [vmem:[%s5 + $0x20] sm:$0xff]
      %v1047 = vld [vmem:[%s5 + $0x28] sm:$0xff]
      %v1048 = vld [vmem:[%s5 + $0x30] sm:$0xff]
      %v1049 = vld [vmem:[%s5 + $0x38] sm:$0xff]
      %v1050 = vld [vmem:[%s5 + $0x40] sm:$0xff]
      %v1051 = vld [vmem:[%s5 + $0x48] sm:$0xff]
      %v1052 = vld [vmem:[%s5 + $0x50] sm:$0xff]
      %v1053 = vld [vmem:[%s5 + $0x58] sm:$0xff]
      %v1054 = vld [vmem:[%s5 + $0x60] sm:$0xff]
      %v1055 = vld [vmem:[%s5 + $0x68] sm:$0xff]
      %v1056 = vld [vmem:[%s5 + $0x70] sm:$0xff]
      %v1057 = vld [vmem:[%s5 + $0x78] sm:$0xff]
      %v1058 = vld [vmem:[%s5 + $0x80] sm:$0xff]
      %v1059 = vld [vmem:[%s5 + $0x88] sm:$0xff]
      %v1060 = vld [vmem:[%s5 + $0x90] sm:$0xff]
      %v1061 = vld [vmem:[%s5 + $0x98] sm:$0xff]
      %v1062 = vld [vmem:[%s5 + $0xa0] sm:$0xff]
      %v1063 = vld [vmem:[%s5 + $0xa8] sm:$0xff]
      %v1064 = vld [vmem:[%s5 + $0xb0] sm:$0xff]
      %v1065 = vld [vmem:[%s5 + $0xb8] sm:$0xff]
      %v1066 = vld [vmem:[%s5 + $0xc0] sm:$0xff]
      %v1067 = vld [vmem:[%s5 + $0xc8] sm:$0xff]
      %v1068 = vld [vmem:[%s5 + $0xd0] sm:$0xff]
      %v1069 = vld [vmem:[%s5 + $0xd8] sm:$0xff]
      %v1070 = vld [vmem:[%s5 + $0xe0] sm:$0xff]
      %v1071 = vld [vmem:[%s5 + $0xe8] sm:$0xff]
      %v1072 = vld [vmem:[%s5 + $0xf0] sm:$0xff]
      %v1073 = vld [vmem:[%s5 + $0xf8] sm:$0xff]
      %v1074 = vld [vmem:[%s6] sm:$0x3]
      %v1076 = vperm.slane %v1074, 0
      %v1077 = vperm.slane %v1074, 1
      %v1112 = vunpack.c.l.b16 %v1042
      %v1113 = vunpack.c.h.b16 %v1042
      %v1114 = vunpack.c.l.b16 %v1043
      %v1115 = vunpack.c.h.b16 %v1043
      %v1116 = vunpack.c.l.b16 %v1044
      %v1117 = vunpack.c.h.b16 %v1044
      %v1118 = vunpack.c.l.b16 %v1045
      %v1119 = vunpack.c.h.b16 %v1045
      %v1120 = vunpack.c.l.b16 %v1046
      %v1121 = vunpack.c.h.b16 %v1046
      %v1122 = vunpack.c.l.b16 %v1047
      %v1123 = vunpack.c.h.b16 %v1047
      %v1124 = vunpack.c.l.b16 %v1048
      %v1125 = vunpack.c.h.b16 %v1048
      %v1126 = vunpack.c.l.b16 %v1049
      %v1127 = vunpack.c.h.b16 %v1049
      %v1128 = vunpack.c.l.b16 %v1050
      %v1129 = vunpack.c.h.b16 %v1050
      %v1130 = vunpack.c.l.b16 %v1051
      %v1131 = vunpack.c.h.b16 %v1051
      %v1132 = vunpack.c.l.b16 %v1052
      %v1133 = vunpack.c.h.b16 %v1052
      %v1134 = vunpack.c.l.b16 %v1053
      %v1135 = vunpack.c.h.b16 %v1053
      %v1136 = vunpack.c.l.b16 %v1054
      %v1137 = vunpack.c.h.b16 %v1054
      %v1138 = vunpack.c.l.b16 %v1055
      %v1139 = vunpack.c.h.b16 %v1055
      %v1140 = vunpack.c.l.b16 %v1056
      %v1141 = vunpack.c.h.b16 %v1056
      %v1142 = vunpack.c.l.b16 %v1057
      %v1143 = vunpack.c.h.b16 %v1057
      %v1144 = vunpack.c.l.b16 %v1058
      %v1145 = vunpack.c.h.b16 %v1058
      %v1146 = vunpack.c.l.b16 %v1059
      %v1147 = vunpack.c.h.b16 %v1059
      %v1148 = vunpack.c.l.b16 %v1060
      %v1149 = vunpack.c.h.b16 %v1060
      %v1150 = vunpack.c.l.b16 %v1061
      %v1151 = vunpack.c.h.b16 %v1061
      %v1152 = vunpack.c.l.b16 %v1062
      %v1153 = vunpack.c.h.b16 %v1062
      %v1154 = vunpack.c.l.b16 %v1063
      %v1155 = vunpack.c.h.b16 %v1063
      %v1156 = vunpack.c.l.b16 %v1064
      %v1157 = vunpack.c.h.b16 %v1064
      %v1158 = vunpack.c.l.b16 %v1065
      %v1159 = vunpack.c.h.b16 %v1065
      %v1160 = vunpack.c.l.b16 %v1066
      %v1161 = vunpack.c.h.b16 %v1066
      %v1162 = vunpack.c.l.b16 %v1067
      %v1163 = vunpack.c.h.b16 %v1067
      %v1164 = vunpack.c.l.b16 %v1068
      %v1165 = vunpack.c.h.b16 %v1068
      %v1166 = vunpack.c.l.b16 %v1069
      %v1167 = vunpack.c.h.b16 %v1069
      %v1168 = vunpack.c.l.b16 %v1070
      %v1169 = vunpack.c.h.b16 %v1070
      %v1170 = vunpack.c.l.b16 %v1071
      %v1171 = vunpack.c.h.b16 %v1071
      %v1172 = vunpack.c.l.b16 %v1072
      %v1173 = vunpack.c.h.b16 %v1072
      %v1174 = vunpack.c.l.b16 %v1073
      %v1175 = vunpack.c.h.b16 %v1073
      %v1176 = vpack.c.b16 %v1114, %v1112
      %v1177 = vpack.c.b16 %v1115, %v1113
      %v1178 = vpack.c.b16 %v1118, %v1116
      %v1179 = vpack.c.b16 %v1119, %v1117
      %v1180 = vpack.c.b16 %v1122, %v1120
      %v1181 = vpack.c.b16 %v1123, %v1121
      %v1182 = vpack.c.b16 %v1126, %v1124
      %v1183 = vpack.c.b16 %v1127, %v1125
      %v1184 = vpack.c.b16 %v1130, %v1128
      %v1185 = vpack.c.b16 %v1131, %v1129
      %v1186 = vpack.c.b16 %v1134, %v1132
      %v1187 = vpack.c.b16 %v1135, %v1133
      %v1188 = vpack.c.b16 %v1138, %v1136
      %v1189 = vpack.c.b16 %v1139, %v1137
      %v1190 = vpack.c.b16 %v1142, %v1140
      %v1191 = vpack.c.b16 %v1143, %v1141
      %v1192 = vpack.c.b16 %v1146, %v1144
      %v1193 = vpack.c.b16 %v1147, %v1145
      %v1194 = vpack.c.b16 %v1150, %v1148
      %v1195 = vpack.c.b16 %v1151, %v1149
      %v1196 = vpack.c.b16 %v1154, %v1152
      %v1197 = vpack.c.b16 %v1155, %v1153
      %v1198 = vpack.c.b16 %v1158, %v1156
      %v1199 = vpack.c.b16 %v1159, %v1157
      %v1200 = vpack.c.b16 %v1162, %v1160
      %v1201 = vpack.c.b16 %v1163, %v1161
      %v1202 = vpack.c.b16 %v1166, %v1164
      %v1203 = vpack.c.b16 %v1167, %v1165
      %v1204 = vpack.c.b16 %v1170, %v1168
      %v1205 = vpack.c.b16 %v1171, %v1169
      %v1206 = vpack.c.b16 %v1174, %v1172
      %v1207 = vpack.c.b16 %v1175, %v1173
      %1240 = vmatpush.bf16.msra.mxu0 %v1190
      %1241 = vmatpush.bf16.msra.mxu0 %v1188
      %1242 = vmatpush.bf16.msra.mxu0 %v1186
      %1243 = vmatpush.bf16.msra.mxu0 %v1184
      %1244 = vmatpush.bf16.msra.mxu0 %v1182
      %1245 = vmatpush.bf16.msra.mxu0 %v1180
      %1246 = vmatpush.bf16.msra.mxu0 %v1178
      %1247 = vmatpush.bf16.msra.mxu0 %v1176
      %1248 = vmatmul.bf16.gmra.mxu0 %v1040
      %v1249 = vpop.f32.mrf.mxu0
      %v1250 = vadd.f32 %v1076, %v1249
      %v1251 = vpop.f32.mrf.mxu0
      %v1252 = vadd.f32 %v1076, %v1251
      %1253 = vdwg.mxu0
      %1254 = vmatpush.bf16.msra.mxu0 %v1206
      %1255 = vmatpush.bf16.msra.mxu0 %v1204
      %1256 = vmatpush.bf16.msra.mxu0 %v1202
      %1257 = vmatpush.bf16.msra.mxu0 %v1200
      %1258 = vmatpush.bf16.msra.mxu0 %v1198
      %1259 = vmatpush.bf16.msra.mxu0 %v1196
      %1260 = vmatpush.bf16.msra.mxu0 %v1194
      %1261 = vmatpush.bf16.msra.mxu0 %v1192
      %1262 = vmatmul.bf16.gmra.mxu0 %v1041
      %v1263 = vpop.f32.mrf.mxu0
      %v1264 = vadd.f32 %v1250, %v1263
      %v1265 = vpop.f32.mrf.mxu0
      %v1266 = vadd.f32 %v1252, %v1265
      %1267 = vdwg.mxu0
      %1268 = vmatpush.bf16.msra.mxu0 %v1191
      %1269 = vmatpush.bf16.msra.mxu0 %v1189
      %1270 = vmatpush.bf16.msra.mxu0 %v1187
      %1271 = vmatpush.bf16.msra.mxu0 %v1185
      %1272 = vmatpush.bf16.msra.mxu0 %v1183
      %1273 = vmatpush.bf16.msra.mxu0 %v1181
      %1274 = vmatpush.bf16.msra.mxu0 %v1179
      %1275 = vmatpush.bf16.msra.mxu0 %v1177
      %1276 = vmatmul.bf16.gmra.mxu0 %v1040
      %v1277 = vpop.f32.mrf.mxu0
      %v1278 = vadd.f32 %v1077, %v1277
      %v1279 = vpop.f32.mrf.mxu0
      %v1280 = vadd.f32 %v1077, %v1279
      %1281 = vdwg.mxu0
      %1282 = vmatpush.bf16.msra.mxu0 %v1207
      %1283 = vmatpush.bf16.msra.mxu0 %v1205
      %1284 = vmatpush.bf16.msra.mxu0 %v1203
      %1285 = vmatpush.bf16.msra.mxu0 %v1201
      %1286 = vmatpush.bf16.msra.mxu0 %v1199
      %1287 = vmatpush.bf16.msra.mxu0 %v1197
      %1288 = vmatpush.bf16.msra.mxu0 %v1195
      %1289 = vmatpush.bf16.msra.mxu0 %v1193
      %1290 = vmatmul.bf16.gmra.mxu0 %v1041
      %v1291 = vpop.f32.mrf.mxu0
      %v1292 = vadd.f32 %v1278, %v1291
      %v1293 = vpop.f32.mrf.mxu0
      %v1294 = vadd.f32 %v1280, %v1293
      %1295 = vdwg.mxu0
      %v1296 = vtanh.pop %v1264
      %v1297 = vtanh.pop %v1292
      %v1298 = vtanh.pop %v1266
      %v1299 = vtanh.pop %v1294
      %v1300 = vpack.c.bf16 %v1298, %v1296
      %v1301 = vpack.c.bf16 %v1299, %v1297
      %v1302 = vld [vmem:[%s7] sm:$0xff]
      %v1303 = vld [vmem:[%s7 + $0x8] sm:$0xff]
      %v1304 = vld [vmem:[%s7 + $0x10] sm:$0xff]
      %v1305 = vld [vmem:[%s7 + $0x18] sm:$0xff]
      %v1306 = vld [vmem:[%s7 + $0x20] sm:$0xff]
      %v1307 = vld [vmem:[%s7 + $0x28] sm:$0xff]
      %v1308 = vld [vmem:[%s7 + $0x30] sm:$0xff]
      %v1309 = vld [vmem:[%s7 + $0x38] sm:$0xff]
      %v1310 = vld [vmem:[%s7 + $0x40] sm:$0xff]
      %v1311 = vld [vmem:[%s7 + $0x48] sm:$0xff]
      %v1312 = vld [vmem:[%s7 + $0x50] sm:$0xff]
      %v1313 = vld [vmem:[%s7 + $0x58] sm:$0xff]
      %v1314 = vld [vmem:[%s7 + $0x60] sm:$0xff]
      %v1315 = vld [vmem:[%s7 + $0x68] sm:$0xff]
      %v1316 = vld [vmem:[%s7 + $0x70] sm:$0xff]
      %v1317 = vld [vmem:[%s7 + $0x78] sm:$0xff]
      %v1318 = vld [vmem:[%s7 + $0x80] sm:$0xff]
      %v1319 = vld [vmem:[%s7 + $0x88] sm:$0xff]
      %v1320 = vld [vmem:[%s7 + $0x90] sm:$0xff]
      %v1321 = vld [vmem:[%s7 + $0x98] sm:$0xff]
      %v1322 = vld [vmem:[%s7 + $0xa0] sm:$0xff]
      %v1323 = vld [vmem:[%s7 + $0xa8] sm:$0xff]
      %v1324 = vld [vmem:[%s7 + $0xb0] sm:$0xff]
      %v1325 = vld [vmem:[%s7 + $0xb8] sm:$0xff]
      %v1326 = vld [vmem:[%s7 + $0xc0] sm:$0xff]
      %v1327 = vld [vmem:[%s7 + $0xc8] sm:$0xff]
      %v1328 = vld [vmem:[%s7 + $0xd0] sm:$0xff]
      %v1329 = vld [vmem:[%s7 + $0xd8] sm:$0xff]
      %v1330 = vld [vmem:[%s7 + $0xe0] sm:$0xff]
      %v1331 = vld [vmem:[%s7 + $0xe8] sm:$0xff]
      %v1332 = vld [vmem:[%s7 + $0xf0] sm:$0xff]
      %v1333 = vld [vmem:[%s7 + $0xf8] sm:$0xff]
      %v1334 = vld [vmem:[%s8] sm:$0x3]
      %v1336 = vperm.slane %v1334, 0
      %v1337 = vperm.slane %v1334, 1
      %v1372 = vunpack.c.l.b16 %v1302
      %v1373 = vunpack.c.h.b16 %v1302
      %v1374 = vunpack.c.l.b16 %v1303
      %v1375 = vunpack.c.h.b16 %v1303
      %v1376 = vunpack.c.l.b16 %v1304
      %v1377 = vunpack.c.h.b16 %v1304
      %v1378 = vunpack.c.l.b16 %v1305
      %v1379 = vunpack.c.h.b16 %v1305
      %v1380 = vunpack.c.l.b16 %v1306
      %v1381 = vunpack.c.h.b16 %v1306
      %v1382 = vunpack.c.l.b16 %v1307
      %v1383 = vunpack.c.h.b16 %v1307
      %v1384 = vunpack.c.l.b16 %v1308
      %v1385 = vunpack.c.h.b16 %v1308
      %v1386 = vunpack.c.l.b16 %v1309
      %v1387 = vunpack.c.h.b16 %v1309
      %v1388 = vunpack.c.l.b16 %v1310
      %v1389 = vunpack.c.h.b16 %v1310
      %v1390 = vunpack.c.l.b16 %v1311
      %v1391 = vunpack.c.h.b16 %v1311
      %v1392 = vunpack.c.l.b16 %v1312
      %v1393 = vunpack.c.h.b16 %v1312
      %v1394 = vunpack.c.l.b16 %v1313
      %v1395 = vunpack.c.h.b16 %v1313
      %v1396 = vunpack.c.l.b16 %v1314
      %v1397 = vunpack.c.h.b16 %v1314
      %v1398 = vunpack.c.l.b16 %v1315
      %v1399 = vunpack.c.h.b16 %v1315
      %v1400 = vunpack.c.l.b16 %v1316
      %v1401 = vunpack.c.h.b16 %v1316
      %v1402 = vunpack.c.l.b16 %v1317
      %v1403 = vunpack.c.h.b16 %v1317
      %v1404 = vunpack.c.l.b16 %v1318
      %v1405 = vunpack.c.h.b16 %v1318
      %v1406 = vunpack.c.l.b16 %v1319
      %v1407 = vunpack.c.h.b16 %v1319
      %v1408 = vunpack.c.l.b16 %v1320
      %v1409 = vunpack.c.h.b16 %v1320
      %v1410 = vunpack.c.l.b16 %v1321
      %v1411 = vunpack.c.h.b16 %v1321
      %v1412 = vunpack.c.l.b16 %v1322
      %v1413 = vunpack.c.h.b16 %v1322
      %v1414 = vunpack.c.l.b16 %v1323
      %v1415 = vunpack.c.h.b16 %v1323
      %v1416 = vunpack.c.l.b16 %v1324
      %v1417 = vunpack.c.h.b16 %v1324
      %v1418 = vunpack.c.l.b16 %v1325
      %v1419 = vunpack.c.h.b16 %v1325
      %v1420 = vunpack.c.l.b16 %v1326
      %v1421 = vunpack.c.h.b16 %v1326
      %v1422 = vunpack.c.l.b16 %v1327
      %v1423 = vunpack.c.h.b16 %v1327
      %v1424 = vunpack.c.l.b16 %v1328
      %v1425 = vunpack.c.h.b16 %v1328
      %v1426 = vunpack.c.l.b16 %v1329
      %v1427 = vunpack.c.h.b16 %v1329
      %v1428 = vunpack.c.l.b16 %v1330
      %v1429 = vunpack.c.h.b16 %v1330
      %v1430 = vunpack.c.l.b16 %v1331
      %v1431 = vunpack.c.h.b16 %v1331
      %v1432 = vunpack.c.l.b16 %v1332
      %v1433 = vunpack.c.h.b16 %v1332
      %v1434 = vunpack.c.l.b16 %v1333
      %v1435 = vunpack.c.h.b16 %v1333
      %v1436 = vpack.c.b16 %v1374, %v1372
      %v1437 = vpack.c.b16 %v1375, %v1373
      %v1438 = vpack.c.b16 %v1378, %v1376
      %v1439 = vpack.c.b16 %v1379, %v1377
      %v1440 = vpack.c.b16 %v1382, %v1380
      %v1441 = vpack.c.b16 %v1383, %v1381
      %v1442 = vpack.c.b16 %v1386, %v1384
      %v1443 = vpack.c.b16 %v1387, %v1385
      %v1444 = vpack.c.b16 %v1390, %v1388
      %v1445 = vpack.c.b16 %v1391, %v1389
      %v1446 = vpack.c.b16 %v1394, %v1392
      %v1447 = vpack.c.b16 %v1395, %v1393
      %v1448 = vpack.c.b16 %v1398, %v1396
      %v1449 = vpack.c.b16 %v1399, %v1397
      %v1450 = vpack.c.b16 %v1402, %v1400
      %v1451 = vpack.c.b16 %v1403, %v1401
      %v1452 = vpack.c.b16 %v1406, %v1404
      %v1453 = vpack.c.b16 %v1407, %v1405
      %v1454 = vpack.c.b16 %v1410, %v1408
      %v1455 = vpack.c.b16 %v1411, %v1409
      %v1456 = vpack.c.b16 %v1414, %v1412
      %v1457 = vpack.c.b16 %v1415, %v1413
      %v1458 = vpack.c.b16 %v1418, %v1416
      %v1459 = vpack.c.b16 %v1419, %v1417
      %v1460 = vpack.c.b16 %v1422, %v1420
      %v1461 = vpack.c.b16 %v1423, %v1421
      %v1462 = vpack.c.b16 %v1426, %v1424
      %v1463 = vpack.c.b16 %v1427, %v1425
      %v1464 = vpack.c.b16 %v1430, %v1428
      %v1465 = vpack.c.b16 %v1431, %v1429
      %v1466 = vpack.c.b16 %v1434, %v1432
      %v1467 = vpack.c.b16 %v1435, %v1433
      %1500 = vmatpush.bf16.msra.mxu0 %v1450
      %1501 = vmatpush.bf16.msra.mxu0 %v1448
      %1502 = vmatpush.bf16.msra.mxu0 %v1446
      %1503 = vmatpush.bf16.msra.mxu0 %v1444
      %1504 = vmatpush.bf16.msra.mxu0 %v1442
      %1505 = vmatpush.bf16.msra.mxu0 %v1440
      %1506 = vmatpush.bf16.msra.mxu0 %v1438
      %1507 = vmatpush.bf16.msra.mxu0 %v1436
      %1508 = vmatmul.bf16.gmra.mxu0 %v1300
      %v1509 = vpop.f32.mrf.mxu0
      %v1510 = vadd.f32 %v1336, %v1509
      %v1511 = vpop.f32.mrf.mxu0
      %v1512 = vadd.f32 %v1336, %v1511
      %1513 = vdwg.mxu0
      %1514 = vmatpush.bf16.msra.mxu0 %v1466
      %1515 = vmatpush.bf16.msra.mxu0 %v1464
      %1516 = vmatpush.bf16.msra.mxu0 %v1462
      %1517 = vmatpush.bf16.msra.mxu0 %v1460
      %1518 = vmatpush.bf16.msra.mxu0 %v1458
      %1519 = vmatpush.bf16.msra.mxu0 %v1456
      %1520 = vmatpush.bf16.msra.mxu0 %v1454
      %1521 = vmatpush.bf16.msra.mxu0 %v1452
      %1522 = vmatmul.bf16.gmra.mxu0 %v1301
      %v1523 = vpop.f32.mrf.mxu0
      %v1524 = vadd.f32 %v1510, %v1523
      %v1525 = vpop.f32.mrf.mxu0
      %v1526 = vadd.f32 %v1512, %v1525
      %1527 = vdwg.mxu0
      %1528 = vmatpush.bf16.msra.mxu0 %v1451
      %1529 = vmatpush.bf16.msra.mxu0 %v1449
      %1530 = vmatpush.bf16.msra.mxu0 %v1447
      %1531 = vmatpush.bf16.msra.mxu0 %v1445
      %1532 = vmatpush.bf16.msra.mxu0 %v1443
      %1533 = vmatpush.bf16.msra.mxu0 %v1441
      %1534 = vmatpush.bf16.msra.mxu0 %v1439
      %1535 = vmatpush.bf16.msra.mxu0 %v1437
      %1536 = vmatmul.bf16.gmra.mxu0 %v1300
      %v1537 = vpop.f32.mrf.mxu0
      %v1538 = vadd.f32 %v1337, %v1537
      %v1539 = vpop.f32.mrf.mxu0
      %v1540 = vadd.f32 %v1337, %v1539
      %1541 = vdwg.mxu0
      %1542 = vmatpush.bf16.msra.mxu0 %v1467
      %1543 = vmatpush.bf16.msra.mxu0 %v1465
      %1544 = vmatpush.bf16.msra.mxu0 %v1463
      %1545 = vmatpush.bf16.msra.mxu0 %v1461
      %1546 = vmatpush.bf16.msra.mxu0 %v1459
      %1547 = vmatpush.bf16.msra.mxu0 %v1457
      %1548 = vmatpush.bf16.msra.mxu0 %v1455
      %1549 = vmatpush.bf16.msra.mxu0 %v1453
      %1550 = vmatmul.bf16.gmra.mxu0 %v1301
      %v1551 = vpop.f32.mrf.mxu0
      %v1552 = vadd.f32 %v1538, %v1551
      %v1553 = vpop.f32.mrf.mxu0
      %v1554 = vadd.f32 %v1540, %v1553
      %1555 = vdwg.mxu0
      %v1556 = vtanh.pop %v1524
      %v1557 = vtanh.pop %v1552
      %v1558 = vtanh.pop %v1526
      %v1559 = vtanh.pop %v1554
      %v1560 = vpack.c.bf16 %v1558, %v1556
      %v1561 = vpack.c.bf16 %v1559, %v1557
      %v1562 = vld [vmem:[%s9] sm:$0xff]
      %v1563 = vld [vmem:[%s9 + $0x8] sm:$0xf]
      %v1564 = vld [vmem:[%s9 + $0xc] sm:$0xff]
      %v1565 = vld [vmem:[%s9 + $0x14] sm:$0xf]
      %v1566 = vld [vmem:[%s9 + $0x18] sm:$0xff]
      %v1567 = vld [vmem:[%s9 + $0x20] sm:$0xf]
      %v1568 = vld [vmem:[%s9 + $0x24] sm:$0xff]
      %v1569 = vld [vmem:[%s9 + $0x2c] sm:$0xf]
      %v1570 = vld [vmem:[%s9 + $0x30] sm:$0xff]
      %v1571 = vld [vmem:[%s9 + $0x38] sm:$0xf]
      %v1572 = vld [vmem:[%s9 + $0x3c] sm:$0xff]
      %v1573 = vld [vmem:[%s9 + $0x44] sm:$0xf]
      %v1574 = vld [vmem:[%s9 + $0x48] sm:$0xff]
      %v1575 = vld [vmem:[%s9 + $0x50] sm:$0xf]
      %v1576 = vld [vmem:[%s9 + $0x54] sm:$0xff]
      %v1577 = vld [vmem:[%s9 + $0x5c] sm:$0xf]
      %v1578 = vld [vmem:[%s9 + $0x60] sm:$0xff]
      %v1579 = vld [vmem:[%s9 + $0x68] sm:$0xf]
      %v1580 = vld [vmem:[%s9 + $0x6c] sm:$0xff]
      %v1581 = vld [vmem:[%s9 + $0x74] sm:$0xf]
      %v1582 = vld [vmem:[%s9 + $0x78] sm:$0xff]
      %v1583 = vld [vmem:[%s9 + $0x80] sm:$0xf]
      %v1584 = vld [vmem:[%s9 + $0x84] sm:$0xff]
      %v1585 = vld [vmem:[%s9 + $0x8c] sm:$0xf]
      %v1586 = vld [vmem:[%s9 + $0x90] sm:$0xff]
      %v1587 = vld [vmem:[%s9 + $0x98] sm:$0xf]
      %v1588 = vld [vmem:[%s9 + $0x9c] sm:$0xff]
      %v1589 = vld [vmem:[%s9 + $0xa4] sm:$0xf]
      %v1590 = vld [vmem:[%s9 + $0xa8] sm:$0xff]
      %v1591 = vld [vmem:[%s9 + $0xb0] sm:$0xf]
      %v1592 = vld [vmem:[%s9 + $0xb4] sm:$0xff]
      %v1593 = vld [vmem:[%s9 + $0xbc] sm:$0xf]
      %v1594 = vld [vmem:[%s9 + $0xc0] sm:$0xff]
      %v1595 = vld [vmem:[%s9 + $0xc8] sm:$0xf]
      %v1596 = vld [vmem:[%s9 + $0xcc] sm:$0xff]
      %v1597 = vld [vmem:[%s9 + $0xd4] sm:$0xf]
      %v1598 = vld [vmem:[%s9 + $0xd8] sm:$0xff]
      %v1599 = vld [vmem:[%s9 + $0xe0] sm:$0xf]
      %v1600 = vld [vmem:[%s9 + $0xe4] sm:$0xff]
      %v1601 = vld [vmem:[%s9 + $0xec] sm:$0xf]
      %v1602 = vld [vmem:[%s9 + $0xf0] sm:$0xff]
      %v1603 = vld [vmem:[%s9 + $0xf8] sm:$0xf]
      %v1604 = vld [vmem:[%s9 + $0xfc] sm:$0xff]
      %v1605 = vld [vmem:[%s9 + $0x104] sm:$0xf]
      %v1606 = vld [vmem:[%s9 + $0x108] sm:$0xff]
      %v1607 = vld [vmem:[%s9 + $0x110] sm:$0xf]
      %v1608 = vld [vmem:[%s9 + $0x114] sm:$0xff]
      %v1609 = vld [vmem:[%s9 + $0x11c] sm:$0xf]
      %v1610 = vld [vmem:[%s9 + $0x120] sm:$0xff]
      %v1611 = vld [vmem:[%s9 + $0x128] sm:$0xf]
      %v1612 = vld [vmem:[%s9 + $0x12c] sm:$0xff]
      %v1613 = vld [vmem:[%s9 + $0x134] sm:$0xf]
      %v1614 = vld [vmem:[%s9 + $0x138] sm:$0xff]
      %v1615 = vld [vmem:[%s9 + $0x140] sm:$0xf]
      %v1616 = vld [vmem:[%s9 + $0x144] sm:$0xff]
      %v1617 = vld [vmem:[%s9 + $0x14c] sm:$0xf]
      %v1618 = vld [vmem:[%s9 + $0x150] sm:$0xff]
      %v1619 = vld [vmem:[%s9 + $0x158] sm:$0xf]
      %v1620 = vld [vmem:[%s9 + $0x15c] sm:$0xff]
      %v1621 = vld [vmem:[%s9 + $0x164] sm:$0xf]
      %v1622 = vld [vmem:[%s9 + $0x168] sm:$0xff]
      %v1623 = vld [vmem:[%s9 + $0x170] sm:$0xf]
      %v1624 = vld [vmem:[%s9 + $0x174] sm:$0xff]
      %v1625 = vld [vmem:[%s9 + $0x17c] sm:$0xf]
      %v1626 = vld [vmem:[%s10] sm:$0x7]
      %v1628 = vperm.slane %v1626, 0
      %v1629 = vperm.slane %v1626, 1
      %v1630 = vperm.slane %v1626, 2
      %v1698 = vunpack.c.l.b16 %v1562
      %v1699 = vunpack.c.h.b16 %v1562
      %v1700 = vunpack.c.l.b16 %v1563
      %v1701 = vunpack.c.l.b16 %v1564
      %v1702 = vunpack.c.h.b16 %v1564
      %v1703 = vunpack.c.l.b16 %v1565
      %v1704 = vunpack.c.l.b16 %v1566
      %v1705 = vunpack.c.h.b16 %v1566
      %v1706 = vunpack.c.l.b16 %v1567
      %v1707 = vunpack.c.l.b16 %v1568
      %v1708 = vunpack.c.h.b16 %v1568
      %v1709 = vunpack.c.l.b16 %v1569
      %v1710 = vunpack.c.l.b16 %v1570
      %v1711 = vunpack.c.h.b16 %v1570
      %v1712 = vunpack.c.l.b16 %v1571
      %v1713 = vunpack.c.l.b16 %v1572
      %v1714 = vunpack.c.h.b16 %v1572
      %v1715 = vunpack.c.l.b16 %v1573
      %v1716 = vunpack.c.l.b16 %v1574
      %v1717 = vunpack.c.h.b16 %v1574
      %v1718 = vunpack.c.l.b16 %v1575
      %v1719 = vunpack.c.l.b16 %v1576
      %v1720 = vunpack.c.h.b16 %v1576
      %v1721 = vunpack.c.l.b16 %v1577
      %v1722 = vunpack.c.l.b16 %v1578
      %v1723 = vunpack.c.h.b16 %v1578
      %v1724 = vunpack.c.l.b16 %v1579
      %v1725 = vunpack.c.l.b16 %v1580
      %v1726 = vunpack.c.h.b16 %v1580
      %v1727 = vunpack.c.l.b16 %v1581
      %v1728 = vunpack.c.l.b16 %v1582
      %v1729 = vunpack.c.h.b16 %v1582
      %v1730 = vunpack.c.l.b16 %v1583
      %v1731 = vunpack.c.l.b16 %v1584
      %v1732 = vunpack.c.h.b16 %v1584
      %v1733 = vunpack.c.l.b16 %v1585
      %v1734 = vunpack.c.l.b16 %v1586
      %v1735 = vunpack.c.h.b16 %v1586
      %v1736 = vunpack.c.l.b16 %v1587
      %v1737 = vunpack.c.l.b16 %v1588
      %v1738 = vunpack.c.h.b16 %v1588
      %v1739 = vunpack.c.l.b16 %v1589
      %v1740 = vunpack.c.l.b16 %v1590
      %v1741 = vunpack.c.h.b16 %v1590
      %v1742 = vunpack.c.l.b16 %v1591
      %v1743 = vunpack.c.l.b16 %v1592
      %v1744 = vunpack.c.h.b16 %v1592
      %v1745 = vunpack.c.l.b16 %v1593
      %v1746 = vunpack.c.l.b16 %v1594
      %v1747 = vunpack.c.h.b16 %v1594
      %v1748 = vunpack.c.l.b16 %v1595
      %v1749 = vunpack.c.l.b16 %v1596
      %v1750 = vunpack.c.h.b16 %v1596
      %v1751 = vunpack.c.l.b16 %v1597
      %v1752 = vunpack.c.l.b16 %v1598
      %v1753 = vunpack.c.h.b16 %v1598
      %v1754 = vunpack.c.l.b16 %v1599
      %v1755 = vunpack.c.l.b16 %v1600
      %v1756 = vunpack.c.h.b16 %v1600
      %v1757 = vunpack.c.l.b16 %v1601
      %v1758 = vunpack.c.l.b16 %v1602
      %v1759 = vunpack.c.h.b16 %v1602
      %v1760 = vunpack.c.l.b16 %v1603
      %v1761 = vunpack.c.l.b16 %v1604
      %v1762 = vunpack.c.h.b16 %v1604
      %v1763 = vunpack.c.l.b16 %v1605
      %v1764 = vunpack.c.l.b16 %v1606
      %v1765 = vunpack.c.h.b16 %v1606
      %v1766 = vunpack.c.l.b16 %v1607
      %v1767 = vunpack.c.l.b16 %v1608
      %v1768 = vunpack.c.h.b16 %v1608
      %v1769 = vunpack.c.l.b16 %v1609
      %v1770 = vunpack.c.l.b16 %v1610
      %v1771 = vunpack.c.h.b16 %v1610
      %v1772 = vunpack.c.l.b16 %v1611
      %v1773 = vunpack.c.l.b16 %v1612
      %v1774 = vunpack.c.h.b16 %v1612
      %v1775 = vunpack.c.l.b16 %v1613
      %v1776 = vunpack.c.l.b16 %v1614
      %v1777 = vunpack.c.h.b16 %v1614
      %v1778 = vunpack.c.l.b16 %v1615
      %v1779 = vunpack.c.l.b16 %v1616
      %v1780 = vunpack.c.h.b16 %v1616
      %v1781 = vunpack.c.l.b16 %v1617
      %v1782 = vunpack.c.l.b16 %v1618
      %v1783 = vunpack.c.h.b16 %v1618
      %v1784 = vunpack.c.l.b16 %v1619
      %v1785 = vunpack.c.l.b16 %v1620
      %v1786 = vunpack.c.h.b16 %v1620
      %v1787 = vunpack.c.l.b16 %v1621
      %v1788 = vunpack.c.l.b16 %v1622
      %v1789 = vunpack.c.h.b16 %v1622
      %v1790 = vunpack.c.l.b16 %v1623
      %v1791 = vunpack.c.l.b16 %v1624
      %v1792 = vunpack.c.h.b16 %v1624
      %v1793 = vunpack.c.l.b16 %v1625
      %v1794 = vpack.c.b16 %v1701, %v1698
      %v1795 = vpack.c.b16 %v1702, %v1699
      %v1796 = vpack.c.b16 %v1703, %v1700
      %v1797 = vpack.c.b16 %v1707, %v1704
      %v1798 = vpack.c.b16 %v1708, %v1705
      %v1799 = vpack.c.b16 %v1709, %v1706
      %v1800 = vpack.c.b16 %v1713, %v1710
      %v1801 = vpack.c.b16 %v1714, %v1711
      %v1802 = vpack.c.b16 %v1715, %v1712
      %v1803 = vpack.c.b16 %v1719, %v1716
      %v1804 = vpack.c.b16 %v1720, %v1717
      %v1805 = vpack.c.b16 %v1721, %v1718
      %v1806 = vpack.c.b16 %v1725, %v1722
      %v1807 = vpack.c.b16 %v1726, %v1723
      %v1808 = vpack.c.b16 %v1727, %v1724
      %v1809 = vpack.c.b16 %v1731, %v1728
      %v1810 = vpack.c.b16 %v1732, %v1729
      %v1811 = vpack.c.b16 %v1733, %v1730
      %v1812 = vpack.c.b16 %v1737, %v1734
      %v1813 = vpack.c.b16 %v1738, %v1735
      %v1814 = vpack.c.b16 %v1739, %v1736
      %v1815 = vpack.c.b16 %v1743, %v1740
      %v1816 = vpack.c.b16 %v1744, %v1741
      %v1817 = vpack.c.b16 %v1745, %v1742
      %v1818 = vpack.c.b16 %v1749, %v1746
      %v1819 = vpack.c.b16 %v1750, %v1747
      %v1820 = vpack.c.b16 %v1751, %v1748
      %v1821 = vpack.c.b16 %v1755, %v1752
      %v1822 = vpack.c.b16 %v1756, %v1753
      %v1823 = vpack.c.b16 %v1757, %v1754
      %v1824 = vpack.c.b16 %v1761, %v1758
      %v1825 = vpack.c.b16 %v1762, %v1759
      %v1826 = vpack.c.b16 %v1763, %v1760
      %v1827 = vpack.c.b16 %v1767, %v1764
      %v1828 = vpack.c.b16 %v1768, %v1765
      %v1829 = vpack.c.b16 %v1769, %v1766
      %v1830 = vpack.c.b16 %v1773, %v1770
      %v1831 = vpack.c.b16 %v1774, %v1771
      %v1832 = vpack.c.b16 %v1775, %v1772
      %v1833 = vpack.c.b16 %v1779, %v1776
      %v1834 = vpack.c.b16 %v1780, %v1777
      %v1835 = vpack.c.b16 %v1781, %v1778
      %v1836 = vpack.c.b16 %v1785, %v1782
      %v1837 = vpack.c.b16 %v1786, %v1783
      %v1838 = vpack.c.b16 %v1787, %v1784
      %v1839 = vpack.c.b16 %v1791, %v1788
      %v1840 = vpack.c.b16 %v1792, %v1789
      %v1841 = vpack.c.b16 %v1793, %v1790
      %1890 = vmatpush.bf16.msra.mxu0 %v1815
      %1891 = vmatpush.bf16.msra.mxu0 %v1812
      %1892 = vmatpush.bf16.msra.mxu0 %v1809
      %1893 = vmatpush.bf16.msra.mxu0 %v1806
      %1894 = vmatpush.bf16.msra.mxu0 %v1803
      %1895 = vmatpush.bf16.msra.mxu0 %v1800
      %1896 = vmatpush.bf16.msra.mxu0 %v1797
      %1897 = vmatpush.bf16.msra.mxu0 %v1794
      %1898 = vmatmul.bf16.gmra.mxu0 %v1560
      %v1899 = vpop.f32.mrf.mxu0
      %v1900 = vadd.f32 %v1628, %v1899
      %v1901 = vpop.f32.mrf.mxu0
      %v1902 = vadd.f32 %v1628, %v1901
      %1903 = vdwg.mxu0
      %1904 = vmatpush.bf16.msra.mxu0 %v1839
      %1905 = vmatpush.bf16.msra.mxu0 %v1836
      %1906 = vmatpush.bf16.msra.mxu0 %v1833
      %1907 = vmatpush.bf16.msra.mxu0 %v1830
      %1908 = vmatpush.bf16.msra.mxu0 %v1827
      %1909 = vmatpush.bf16.msra.mxu0 %v1824
      %1910 = vmatpush.bf16.msra.mxu0 %v1821
      %1911 = vmatpush.bf16.msra.mxu0 %v1818
      %1912 = vmatmul.bf16.gmra.mxu0 %v1561
      %v1913 = vpop.f32.mrf.mxu0
      %v1914 = vadd.f32 %v1900, %v1913
      %v1915 = vpop.f32.mrf.mxu0
      %v1916 = vadd.f32 %v1902, %v1915
      %1917 = vdwg.mxu0
      %1918 = vmatpush.bf16.msra.mxu0 %v1816
      %1919 = vmatpush.bf16.msra.mxu0 %v1813
      %1920 = vmatpush.bf16.msra.mxu0 %v1810
      %1921 = vmatpush.bf16.msra.mxu0 %v1807
      %1922 = vmatpush.bf16.msra.mxu0 %v1804
      %1923 = vmatpush.bf16.msra.mxu0 %v1801
      %1924 = vmatpush.bf16.msra.mxu0 %v1798
      %1925 = vmatpush.bf16.msra.mxu0 %v1795
      %1926 = vmatmul.bf16.gmra.mxu0 %v1560
      %v1927 = vpop.f32.mrf.mxu0
      %v1928 = vadd.f32 %v1629, %v1927
      %v1929 = vpop.f32.mrf.mxu0
      %v1930 = vadd.f32 %v1629, %v1929
      %1931 = vdwg.mxu0
      %1932 = vmatpush.bf16.msra.mxu0 %v1840
      %1933 = vmatpush.bf16.msra.mxu0 %v1837
      %1934 = vmatpush.bf16.msra.mxu0 %v1834
      %1935 = vmatpush.bf16.msra.mxu0 %v1831
      %1936 = vmatpush.bf16.msra.mxu0 %v1828
      %1937 = vmatpush.bf16.msra.mxu0 %v1825
      %1938 = vmatpush.bf16.msra.mxu0 %v1822
      %1939 = vmatpush.bf16.msra.mxu0 %v1819
      %1940 = vmatmul.bf16.gmra.mxu0 %v1561
      %v1941 = vpop.f32.mrf.mxu0
      %v1942 = vadd.f32 %v1928, %v1941
      %v1943 = vpop.f32.mrf.mxu0
      %v1944 = vadd.f32 %v1930, %v1943
      %1945 = vdwg.mxu0
      %1946 = vmatpush.bf16.msra.mxu0 %v1817
      %1947 = vmatpush.bf16.msra.mxu0 %v1814
      %1948 = vmatpush.bf16.msra.mxu0 %v1811
      %1949 = vmatpush.bf16.msra.mxu0 %v1808
      %1950 = vmatpush.bf16.msra.mxu0 %v1805
      %1951 = vmatpush.bf16.msra.mxu0 %v1802
      %1952 = vmatpush.bf16.msra.mxu0 %v1799
      %1953 = vmatpush.bf16.msra.mxu0 %v1796
      %1954 = vmatmul.bf16.gmra.mxu0 %v1560
      %v1955 = vpop.f32.mrf.mxu0
      %v1956 = vadd.f32 %v1630, %v1955
      %v1957 = vpop.f32.mrf.mxu0
      %v1958 = vadd.f32 %v1630, %v1957
      %1959 = vdwg.mxu0
      %1960 = vmatpush.bf16.msra.mxu0 %v1841
      %1961 = vmatpush.bf16.msra.mxu0 %v1838
      %1962 = vmatpush.bf16.msra.mxu0 %v1835
      %1963 = vmatpush.bf16.msra.mxu0 %v1832
      %1964 = vmatpush.bf16.msra.mxu0 %v1829
      %1965 = vmatpush.bf16.msra.mxu0 %v1826
      %1966 = vmatpush.bf16.msra.mxu0 %v1823
      %1967 = vmatpush.bf16.msra.mxu0 %v1820
      %1968 = vmatmul.bf16.gmra.mxu0 %v1561
      %v1969 = vpop.f32.mrf.mxu0
      %v1970 = vadd.f32 %v1956, %v1969
      %v1971 = vpop.f32.mrf.mxu0
      %v1972 = vadd.f32 %v1958, %v1971
      %1973 = vdwg.mxu0
      %v1974 = vlaneseq
      %v1975 = vand.u32 %v1974, 127
      %v1976 = vadd.s32 %v1975, 128
      %v1977 = vadd.s32 %v1975, 256
      %vm1978 = vcmp.lt.s32.totalorder %v1975, 93
      %vm1979 = vcmp.lt.s32.totalorder %v1976, 93
      %vm1980 = vcmp.lt.s32.totalorder %v1977, 93
      %v1981 = vand.u32 2147483647, %v1914
      %v1982 = vand.u32 2147483647, %v1942
      %v1983 = vand.u32 2147483647, %v1970
      %v1984 = vand.u32 2147483647, %v1916
      %v1985 = vand.u32 2147483647, %v1944
      %v1986 = vand.u32 2147483647, %v1972
      %v1987 = vsel %vm1978, %v1981, %v1914
      %v1988 = vsel %vm1979, %v1982, %v1942
      %v1989 = vsel %vm1980, %v1983, %v1970
      %v1990 = vsel %vm1978, %v1984, %v1916
      %v1991 = vsel %vm1979, %v1985, %v1944
      %v1992 = vsel %vm1980, %v1986, %v1972
      %1993 = vst [vmem:[%s393] sm:$0xff] %v1987
      %1994 = vst [vmem:[%s393 + $0x8] sm:$0xff] %v1988
      %vm1995 = vcmask 687104
      %1996 = vst.msk [vmem:[%s393 + $0x10] sm:$0xff] %vm1995, %v1989
      %1997 = vst [vmem:[%s393 + $0x18] sm:$0xff] %v1990
      %1998 = vst [vmem:[%s393 + $0x20] sm:$0xff] %v1991
      %1999 = vst.msk [vmem:[%s393 + $0x28] sm:$0xff] %vm1995, %v1992
      %s2000 = smul.u32 2, %s22
      %p2001 = scmp.lt.s32.totalorder %s2000, 3
      %s2002 = scalar_select %p2001, %s2000, 3
      %s2003 = smul.addr %s2002, 3
      %s2004 = smul.addr %s2003, 8
      %s2005 = scalar_lea.vmem %s11, %s2004
      // Predicated region
      $region65: #{net_cno_forward.1} parent=63 // pred_check
        %p2006 = pneg %p276
      $region66: #{net_cno_forward.1} parent=63 // pred_check_branch
        %2008 = sbr.rel (%p2006) target = $region68
      $region67: #{net_cno_forward.1} parent=63 // pred_region
        %s2009 = smul.u32 2, %s22
      $region68: #{net_cno_forward.1} parent=63 // pred_fallthru
        _
    $region64: #{net_cno_forward.1} parent=5 // pred_fallthru
      _
    %p2010 = scmp.le.s32.totalorder 2, %s17
    // Predicated region
    $region69: #{net_cno_forward.1} parent=5 // pred_check
      %p2011 = pneg %p2010
    $region70: #{net_cno_forward.1} parent=5 // pred_check_branch
      %2013 = sbr.rel (%p2011) target = $region72
    $region71: #{net_cno_forward.1} parent=5 // pred_region
      %s2014 = ssub.s32 %s17, 2
      // Predicated region
      $region73: #{net_cno_forward.1} parent=71 // pred_check
        %p2015 = pneg %p282
      $region74: #{net_cno_forward.1} parent=71 // pred_check_branch
        %2017 = sbr.rel (%p2015) target = $region76
      $region75: #{net_cno_forward.1} parent=71 // pred_region
        %s2018 = smul.u32 2, %s23
        %p2019 = scmp.lt.s32.totalorder %s2018, 3
        %s2020 = scalar_select %p2019, %s2018, 3
        %s2021 = smul.addr %s2020, 3
        %s2022 = smul.addr %s2021, 8
        %s2023 = scalar_lea.vmem %s11, %s2022
      $region76: #{net_cno_forward.1} parent=71 // pred_fallthru
        _
    $region72: #{net_cno_forward.1} parent=5 // pred_fallthru
      _
  $region6: #{net_cno_forward.1} parent=0 // loop_footer
    %s21 = sadd.s32 1, %s17
  $region7: #{net_cno_forward.1} parent=0 // loop_footer_branch
    %16 = sbr.rel target = $region3
  $region8: #{net_cno_forward.1} parent=0 // loop_exit
    _

</llo_original>
